<compile_context>
chip_gen: v5e
topology: v5e:2x2
jax: 0.10.0
libtpu: 0.0.40
codegen_flags: <defaults>
</compile_context>

<pallas_src>
import functools

import jax
import jax.numpy as jnp
from jax.experimental import pallas as pl
from jax.experimental.pallas import tpu as pltpu


# ----------------------------- Pallas kernel ------------------------------ #

def _generator_kernel(hsi_ref, rgb_ref,
                      w_eh_ref, b_eh_ref,     # encoder_hr_hsi^T : (E, Bh), (E, 1)
                      w_er_ref, b_er_ref,     # encoder_RGB^T    : (E, Br), (E, 1)
                      w_dh_ref, b_dh_ref,     # decoder_hsi^T    : (Bh, E), (Bh, 1)
                      w_pr_ref, b_pr_ref,     # (dec_hsi o adaption)^T : (Bh, E), (Bh, 1)
                      w_dr_ref, b_dr_ref,     # decoder_RGB^T    : (Br, E), (Br, 1)
                      a_hsi_ref, a_rgb_ref, hrhsi_ref, rgb_out_ref,
                      pred_hat_ref, pred_ref):
    f32 = jnp.float32

    def softmax_ch(z):
        # softmax over the channel (sublane) axis -- exact normalization.
        z = z - jnp.max(z, axis=0, keepdims=True)
        e = jnp.exp(z)
        return e / jnp.sum(e, axis=0, keepdims=True)

    hsi = hsi_ref[...]          # (Bh, tp) channel-major, f32
    rgb = rgb_ref[...]          # (Br, tp)

    # encoder_hr_hsi: 1x1 conv (per-pixel linear) + softmax over endmembers.
    z_h = jnp.dot(w_eh_ref[...], hsi, preferred_element_type=f32) + b_eh_ref[...]
    a_h = softmax_ch(z_h)                                     # (E, tp)
    a_hsi_ref[...] = a_h.astype(a_hsi_ref.dtype)

    # decoder_hsi(abundance_hsi) -> hrhsi
    hrhsi_ref[...] = (jnp.dot(w_dh_ref[...], a_h, preferred_element_type=f32)
                      + b_dh_ref[...]).astype(hrhsi_ref.dtype)

    # encoder_RGB: 1x1 conv + softmax.
    z_r = jnp.dot(w_er_ref[...], rgb, preferred_element_type=f32) + b_er_ref[...]
    a_r = softmax_ch(z_r)                                     # (E, tp)
    a_rgb_ref[...] = a_r.astype(a_rgb_ref.dtype)

    # Three decoders on abundance_RGB, each written straight to its ref
    # (no concatenated temp, no sublane-sliced stores; MXU has huge slack).
    pred_hat_ref[...] = (jnp.dot(w_dh_ref[...], a_r, preferred_element_type=f32)
                         + b_dh_ref[...]).astype(pred_hat_ref.dtype)     # decoder_hsi(a_r)
    pred_ref[...] = (jnp.dot(w_pr_ref[...], a_r, preferred_element_type=f32)
                     + b_pr_ref[...]).astype(pred_ref.dtype)             # adaption folded in
    rgb_out_ref[...] = (jnp.dot(w_dr_ref[...], a_r, preferred_element_type=f32)
                        + b_dr_ref[...]).astype(rgb_out_ref.dtype)       # decoder_RGB(a_r)


# ------------------------------- Wrapper ----------------------------------- #

def generator_forward(hsi, rgb, params, *, tp_target=16384,
                      out_dtype=jnp.bfloat16):
    """hsi: (N, band_hsi, H, W) NCHW ; rgb: (N, band_RGB, H, W) NCHW.

    Pass out_dtype=jnp.float32 to exactly match the PyTorch module's dtype
    (bf16 default is the memory-bandwidth optimization)."""
    N, Bh, H, W = hsi.shape
    _, Br, _, _ = rgb.shape
    E = params["w_enc_hsi"].shape[1]
    HW = H * W

    # NCHW -> (N, C, H*W): a free reshape (channel-major, pixels on lanes).
    # Pad only to the next multiple of 128 (tiny / usually a no-op), NOT to a
    # multiple of the pixel tile -- the old full jnp.pad copy is gone.
    hw128 = pl.cdiv(HW, 128) * 128
    hsi_cm = hsi.reshape(N, Bh, HW)
    rgb_cm = rgb.reshape(N, Br, HW)
    if hw128 != HW:
        pad = ((0, 0), (0, 0), (0, hw128 - HW))
        hsi_cm = jnp.pad(hsi_cm, pad)
        rgb_cm = jnp.pad(rgb_cm, pad)

    # Pixel-tile: big (amortize ~0.35us/step), multiple of 128, capped by the
    # image.  A ragged last tile (hw128 % tp != 0) is fine: all ops are
    # per-lane independent and out-of-bounds writes are dropped.
    tp = min(pl.cdiv(tp_target, 128) * 128, hw128)
    n_tiles = pl.cdiv(hw128, tp)
    # v7x megacore: guarantee >= 2 steps on the parallel grid axes.
    if N * n_tiles < 2 and hw128 >= 256:
        tp = pl.cdiv(pl.cdiv(hw128, 2), 128) * 128
        n_tiles = pl.cdiv(hw128, tp)

    # ---- one-time weight plumbing (wrapper-side, negligible) ----
    w_eh_t = params["w_enc_hsi"].T          # (E, Bh)
    b_eh = params["b_enc_hsi"].T            # (E, 1)
    w_er_t = params["w_enc_rgb"].T          # (E, Br)
    b_er = params["b_enc_rgb"].T            # (E, 1)
    w_dh_t = params["w_dec_hsi"].T          # (Bh, E)
    b_dh = params["b_dec_hsi"].T            # (Bh, 1)
    w_dr_t = params["w_dec_rgb"].T          # (Br, E)
    b_dr = params["b_dec_rgb"].T            # (Br, 1)
    # Fold decoder_adaption into decoder_hsi:
    #   pred = (a_r @ Wdh + bdh) @ Wad + bad = a_r @ (Wdh @ Wad) + (bdh @ Wad + bad)
    w_pr = (params["w_dec_hsi"] @ params["w_adapt"]).T                        # (Bh, E)
    b_pr = (params["b_dec_hsi"] @ params["w_adapt"] + params["b_adapt"]).T    # (Bh, 1)

    # ---- specs ----
    def row_spec(c):  # per-image, per-pixel-tile, full channel extent
        return pl.BlockSpec((pl.Squeezed(), c, tp), lambda n, i: (n, 0, i))

    def full_spec(shape):  # replicated weights / biases
        return pl.BlockSpec(shape, lambda n, i: (0, 0))

    out_shapes = (
        jax.ShapeDtypeStruct((N, E, hw128), out_dtype),   # abundance_hsi   (NC(HW))
        jax.ShapeDtypeStruct((N, E, hw128), out_dtype),   # abundance_RGB   (NC(HW))
        jax.ShapeDtypeStruct((N, Bh, hw128), out_dtype),  # hrhsi           (NC(HW))
        jax.ShapeDtypeStruct((N, Br, hw128), out_dtype),  # RGB             (NC(HW))
        jax.ShapeDtypeStruct((N, Bh, hw128), out_dtype),  # pred_hrhsi_hat  (NC(HW))
        jax.ShapeDtypeStruct((N, Bh, hw128), out_dtype),  # pred_hrhsi      (NC(HW))
    )

    # Advisory cost estimate so XLA can overlap the surrounding slice /
    # transpose ops with the kernel.
    in_bytes = (Bh + Br) * hsi.dtype.itemsize * N * hw128
    out_bytes = (2 * E + 3 * Bh + Br) * (jnp.finfo(out_dtype).bits // 8) * N * hw128
    macs_per_px = E * (Bh + Br) + E * (3 * Bh + Br)
    cost = pl.CostEstimate(flops=2 * macs_per_px * N * hw128,
                           transcendentals=2 * E * N * hw128,
                           bytes_accessed=in_bytes + out_bytes)

    outs = pl.pallas_call(
        _generator_kernel,
        out_shape=out_shapes,
        grid_spec=pltpu.PrefetchScalarGridSpec(
            num_scalar_prefetch=0,
            grid=(N, n_tiles),
            in_specs=[
                row_spec(Bh), row_spec(Br),
                full_spec((E, Bh)), full_spec((E, 1)),
                full_spec((E, Br)), full_spec((E, 1)),
                full_spec((Bh, E)), full_spec((Bh, 1)),
                full_spec((Bh, E)), full_spec((Bh, 1)),
                full_spec((Br, E)), full_spec((Br, 1)),
            ],
            out_specs=[
                row_spec(E), row_spec(E), row_spec(Bh),
                row_spec(Br), row_spec(Bh), row_spec(Bh),
            ],
        ),
        compiler_params=pltpu.CompilerParams(
            dimension_semantics=("parallel", "parallel"),
            vmem_limit_bytes=48 * 1024 * 1024),
        cost_estimate=cost,
    )(hsi_cm, rgb_cm,
      w_eh_t, b_eh, w_er_t, b_er, w_dh_t, b_dh, w_pr, b_pr, w_dr_t, b_dr)

    a_hsi_cm, a_rgb_cm, hrhsi_cm, rgb_cm_out, pred_hat_cm, pred_cm = outs

    # Un-pad + reshape: (N, C, HW) -> (N, C, H, W) is free and already matches
    # the NCHW outputs of the PyTorch module (abundances and *.permute(0,3,1,2)).
    def to_nchw(a, c):
        a = a if hw128 == HW else a[:, :, :HW]
        return a.reshape(N, c, H, W)

    abundance_hsi = to_nchw(a_hsi_cm, E)
    abundance_rgb = to_nchw(a_rgb_cm, E)
    hrhsi1 = to_nchw(hrhsi_cm, Bh)           # == hrhsi.permute(0,3,1,2)
    rgb1 = to_nchw(rgb_cm_out, Br)           # == RGB.permute(0,3,1,2)
    pred_hrhsi1 = to_nchw(pred_cm, Bh)       # == pred_hrhsi.permute(0,3,1,2)
    # The module also returns the two prediction tensors in their raw NHWC
    # decoder layout; these are the only remaining layout passes (half-cost
    # now that outputs are bf16, and kept out of the kernel to preserve
    # lane-dense stores).
    # TODO(synk): drop these two transposes if downstream consumes NCHW only.
    pred_hat_nhwc = jnp.transpose(to_nchw(pred_hat_cm, Bh), (0, 2, 3, 1))
    pred_nhwc = jnp.transpose(pred_hrhsi1, (0, 2, 3, 1))

    return (abundance_hsi, abundance_rgb, hrhsi1, rgb1,
            pred_hrhsi1, pred_hat_nhwc, pred_nhwc)


# --------------------------- Parameter init -------------------------------- #

def init_params(key, endmember, band_hsi, band_rgb):
    ks = jax.random.split(key, 10)

    def lin(k, fan_in, shape):
        bound = 1.0 / jnp.sqrt(fan_in)
        return jax.random.uniform(k, shape, jnp.float32, -bound, bound)

    return {
        "w_enc_hsi": lin(ks[0], band_hsi, (band_hsi, endmember)),
        "b_enc_hsi": lin(ks[1], band_hsi, (1, endmember)),
        "w_dec_hsi": lin(ks[2], endmember, (endmember, band_hsi)),
        "b_dec_hsi": lin(ks[3], endmember, (1, band_hsi)),
        "w_enc_rgb": lin(ks[4], band_rgb, (band_rgb, endmember)),
        "b_enc_rgb": lin(ks[5], band_rgb, (1, endmember)),
        "w_dec_rgb": lin(ks[6], endmember, (endmember, band_rgb)),
        "b_dec_rgb": lin(ks[7], endmember, (1, band_rgb)),
        "w_adapt": lin(ks[8], band_hsi, (band_hsi, band_hsi)),
        "b_adapt": lin(ks[9], band_hsi, (1, band_hsi)),
    }


# ----------------------------- Pure-JAX reference --------------------------- #

def reference_forward(hsi, rgb, params):
    N, Bh, H, W = hsi.shape
    Br = rgb.shape[1]
    E = params["w_enc_hsi"].shape[1]
    hsi_px = jnp.transpose(hsi, (0, 2, 3, 1)).reshape(-1, Bh)
    rgb_px = jnp.transpose(rgb, (0, 2, 3, 1)).reshape(-1, Br)
    a_h = jax.nn.softmax(hsi_px @ params["w_enc_hsi"] + params["b_enc_hsi"], axis=-1)
    a_r = jax.nn.softmax(rgb_px @ params["w_enc_rgb"] + params["b_enc_rgb"], axis=-1)
    hr = a_h @ params["w_dec_hsi"] + params["b_dec_hsi"]
    rgb_rec = a_r @ params["w_dec_rgb"] + params["b_dec_rgb"]
    p_hat = a_r @ params["w_dec_hsi"] + params["b_dec_hsi"]
    pred = p_hat @ params["w_adapt"] + params["b_adapt"]
    to_nhwc = lambda a, c: a.reshape(N, H, W, c)
    to_nchw = lambda a, c: jnp.transpose(to_nhwc(a, c), (0, 3, 1, 2))
    return (to_nchw(a_h, E), to_nchw(a_r, E), to_nchw(hr, Bh), to_nchw(rgb_rec, Br),
            to_nchw(pred, Bh), to_nhwc(p_hat, Bh), to_nhwc(pred, Bh))


# --------------------------------- Main ------------------------------------ #

if __name__ == "__main__":
    endmember, band_hsi, band_rgb = 8, 16, 3
    N, H, W = 2, 16, 16

    key = jax.random.PRNGKey(0)
    k_hsi, k_rgb, k_par = jax.random.split(key, 3)
    hsi = jax.random.uniform(k_hsi, (N, band_hsi, H, W), jnp.float32)
    rgb = jax.random.uniform(k_rgb, (N, band_rgb, H, W), jnp.float32)
    params = init_params(k_par, endmember, band_hsi, band_rgb)

    fwd = jax.jit(functools.partial(generator_forward, params=params))
    outs = jax.block_until_ready(fwd(hsi, rgb))

    expected_shapes = [
        (N, endmember, H, W),   # abundance_hsi
        (N, endmember, H, W),   # abundance_RGB
        (N, band_hsi, H, W),    # hrhsi1
        (N, band_rgb, H, W),    # RGB1
        (N, band_hsi, H, W),    # pred_hrhsi1
        (N, H, W, band_hsi),    # pred_hrhsi_hat
        (N, H, W, band_hsi),    # pred_hrhsi
    ]
    assert [tuple(o.shape) for o in outs] == expected_shapes, \
        [tuple(o.shape) for o in outs]
    assert all(bool(jnp.all(jnp.isfinite(o.astype(jnp.float32)))) for o in outs)

    # abundances are softmax outputs -> channel sums ~ 1 (bf16 storage, exact
    # normalization inside the kernel)
    assert bool(jnp.allclose(jnp.sum(outs[0].astype(jnp.float32), axis=1), 1.0,
                             atol=1e-2))
    assert bool(jnp.allclose(jnp.sum(outs[1].astype(jnp.float32), axis=1), 1.0,
                             atol=1e-2))

    # numerical check against a pure-JAX f32 reference (tolerance covers the
    # bf16 output storage and the folded adaption weights)
    refs = reference_forward(hsi, rgb, params)
    for o, r in zip(outs, refs):
        o32 = o.astype(jnp.float32)
        assert bool(jnp.allclose(o32, r, rtol=2e-2, atol=2e-2)), \
            float(jnp.max(jnp.abs(o32 - r)))

    print("KERNEL_OK")
</pallas_src>

<mosaic_0001>
module attributes {stable_mosaic.version = 11 : i64} {
  func.func @_generator_kernel(%arg0: i32, %arg1: i32, %arg2: memref<1x16x256xf32, #tpu.memory_space<vmem>>, %arg3: memref<1x3x256xf32, #tpu.memory_space<vmem>>, %arg4: memref<8x16xf32, #tpu.memory_space<vmem>>, %arg5: memref<8x1xf32, #tpu.memory_space<vmem>>, %arg6: memref<8x3xf32, #tpu.memory_space<vmem>>, %arg7: memref<8x1xf32, #tpu.memory_space<vmem>>, %arg8: memref<16x8xf32, #tpu.memory_space<vmem>>, %arg9: memref<16x1xf32, #tpu.memory_space<vmem>>, %arg10: memref<16x8xf32, #tpu.memory_space<vmem>>, %arg11: memref<16x1xf32, #tpu.memory_space<vmem>>, %arg12: memref<3x8xf32, #tpu.memory_space<vmem>>, %arg13: memref<3x1xf32, #tpu.memory_space<vmem>>, %arg14: memref<1x8x256xbf16, #tpu.memory_space<vmem>>, %arg15: memref<1x8x256xbf16, #tpu.memory_space<vmem>>, %arg16: memref<1x16x256xbf16, #tpu.memory_space<vmem>>, %arg17: memref<1x3x256xbf16, #tpu.memory_space<vmem>>, %arg18: memref<1x16x256xbf16, #tpu.memory_space<vmem>>, %arg19: memref<1x16x256xbf16, #tpu.memory_space<vmem>>) attributes {dimension_semantics = [#tpu.dimension_semantics<parallel>, #tpu.dimension_semantics<parallel>], iteration_bounds = array<i64: 2, 1>, scalar_prefetch = 0 : i64, scratch_operands = 0 : i64, tpu.core_type = #tpu.core_type<tc>, window_params = [{transform_indices = @transform_0, window_bounds = array<i64: 1, 16, 256>}, {transform_indices = @transform_1, window_bounds = array<i64: 1, 3, 256>}, {pipeline_mode = #tpu.pipeline_mode<synchronous>, transform_indices = @transform_2, window_bounds = array<i64: 8, 16>}, {pipeline_mode = #tpu.pipeline_mode<synchronous>, transform_indices = @transform_3, window_bounds = array<i64: 8, 1>}, {pipeline_mode = #tpu.pipeline_mode<synchronous>, transform_indices = @transform_4, window_bounds = array<i64: 8, 3>}, {pipeline_mode = #tpu.pipeline_mode<synchronous>, transform_indices = @transform_5, window_bounds = array<i64: 8, 1>}, {pipeline_mode = #tpu.pipeline_mode<synchronous>, transform_indices = @transform_6, window_bounds = array<i64: 16, 8>}, {pipeline_mode = #tpu.pipeline_mode<synchronous>, transform_indices = @transform_7, window_bounds = array<i64: 16, 1>}, {pipeline_mode = #tpu.pipeline_mode<synchronous>, transform_indices = @transform_8, window_bounds = array<i64: 16, 8>}, {pipeline_mode = #tpu.pipeline_mode<synchronous>, transform_indices = @transform_9, window_bounds = array<i64: 16, 1>}, {pipeline_mode = #tpu.pipeline_mode<synchronous>, transform_indices = @transform_10, window_bounds = array<i64: 3, 8>}, {pipeline_mode = #tpu.pipeline_mode<synchronous>, transform_indices = @transform_11, window_bounds = array<i64: 3, 1>}, {transform_indices = @transform_12, window_bounds = array<i64: 1, 8, 256>}, {transform_indices = @transform_13, window_bounds = array<i64: 1, 8, 256>}, {transform_indices = @transform_14, window_bounds = array<i64: 1, 16, 256>}, {transform_indices = @transform_15, window_bounds = array<i64: 1, 3, 256>}, {transform_indices = @transform_16, window_bounds = array<i64: 1, 16, 256>}, {transform_indices = @transform_17, window_bounds = array<i64: 1, 16, 256>}]} {
    %c0 = arith.constant 0 : index
    %c0_0 = arith.constant 0 : index
    %c0_1 = arith.constant 0 : index
    %0 = vector.load %arg2[%c0, %c0_0, %c0_1] : memref<1x16x256xf32, #tpu.memory_space<vmem>>, vector<1x16x256xf32>
    %1 = vector.shape_cast %0 : vector<1x16x256xf32> to vector<16x256xf32>
    %c0_2 = arith.constant 0 : index
    %c0_3 = arith.constant 0 : index
    %c0_4 = arith.constant 0 : index
    %2 = vector.load %arg3[%c0_2, %c0_3, %c0_4] : memref<1x3x256xf32, #tpu.memory_space<vmem>>, vector<1x3x256xf32>
    %3 = vector.shape_cast %2 : vector<1x3x256xf32> to vector<3x256xf32>
    %c0_5 = arith.constant 0 : index
    %c0_6 = arith.constant 0 : index
    %4 = vector.load %arg4[%c0_5, %c0_6] : memref<8x16xf32, #tpu.memory_space<vmem>>, vector<8x16xf32>
    %cst = arith.constant dense<0.000000e+00> : vector<8x256xf32>
    %5 = tpu.matmul %4, %1, %cst {dimension_numbers = #tpu.dot_dimension_numbers<[1], [0], [0], [1], [0, 0, 1, 1], [], []>} : vector<8x16xf32>, vector<16x256xf32>, vector<8x256xf32> -> vector<8x256xf32>
    %c0_7 = arith.constant 0 : index
    %c0_8 = arith.constant 0 : index
    %6 = vector.load %arg5[%c0_7, %c0_8] : memref<8x1xf32, #tpu.memory_space<vmem>>, vector<8x1xf32>
    %7 = vector.broadcast %6 : vector<8x1xf32> to vector<8x256xf32>
    %8 = arith.addf %5, %7 : vector<8x256xf32>
    %cst_9 = arith.constant dense<0xFF800000> : vector<256xf32>
    %9 = vector.multi_reduction <maximumf>, %8, %cst_9 [0] : vector<8x256xf32> to vector<256xf32>
    %10 = vector.shape_cast %9 : vector<256xf32> to vector<1x256xf32>
    %11 = vector.broadcast %10 : vector<1x256xf32> to vector<8x256xf32>
    %12 = arith.subf %8, %11 : vector<8x256xf32>
    %13 = math.exp %12 : vector<8x256xf32>
    %cst_10 = arith.constant dense<0.000000e+00> : vector<256xf32>
    %14 = vector.multi_reduction <add>, %13, %cst_10 [0] : vector<8x256xf32> to vector<256xf32>
    %15 = vector.shape_cast %14 : vector<256xf32> to vector<1x256xf32>
    %16 = vector.broadcast %15 : vector<1x256xf32> to vector<8x256xf32>
    %17 = arith.divf %13, %16 : vector<8x256xf32>
    %18 = arith.truncf %17 : vector<8x256xf32> to vector<8x256xbf16>
    %c0_11 = arith.constant 0 : index
    %c0_12 = arith.constant 0 : index
    %c0_13 = arith.constant 0 : index
    %19 = vector.load %arg14[%c0_11, %c0_12, %c0_13] : memref<1x8x256xbf16, #tpu.memory_space<vmem>>, vector<1x8x256xbf16>
    %20 = vector.shape_cast %19 : vector<1x8x256xbf16> to vector<8x256xbf16>
    %21 = vector.shape_cast %18 : vector<8x256xbf16> to vector<1x8x256xbf16>
    tpu.vector_store %arg14[%c0_11, %c0_12, %c0_13], %21 {strides = array<i32>} : memref<1x8x256xbf16, #tpu.memory_space<vmem>>, vector<1x8x256xbf16>,
    %c0_14 = arith.constant 0 : index
    %c0_15 = arith.constant 0 : index
    %22 = vector.load %arg8[%c0_14, %c0_15] : memref<16x8xf32, #tpu.memory_space<vmem>>, vector<16x8xf32>
    %cst_16 = arith.constant dense<0.000000e+00> : vector<16x256xf32>
    %23 = tpu.matmul %22, %17, %cst_16 {dimension_numbers = #tpu.dot_dimension_numbers<[1], [0], [0], [1], [0, 0, 1, 1], [], []>} : vector<16x8xf32>, vector<8x256xf32>, vector<16x256xf32> -> vector<16x256xf32>
    %c0_17 = arith.constant 0 : index
    %c0_18 = arith.constant 0 : index
    %24 = vector.load %arg9[%c0_17, %c0_18] : memref<16x1xf32, #tpu.memory_space<vmem>>, vector<16x1xf32>
    %25 = vector.broadcast %24 : vector<16x1xf32> to vector<16x256xf32>
    %26 = arith.addf %23, %25 : vector<16x256xf32>
    %27 = arith.truncf %26 : vector<16x256xf32> to vector<16x256xbf16>
    %c0_19 = arith.constant 0 : index
    %c0_20 = arith.constant 0 : index
    %c0_21 = arith.constant 0 : index
    %28 = vector.load %arg16[%c0_19, %c0_20, %c0_21] : memref<1x16x256xbf16, #tpu.memory_space<vmem>>, vector<1x16x256xbf16>
    %29 = vector.shape_cast %28 : vector<1x16x256xbf16> to vector<16x256xbf16>
    %30 = vector.shape_cast %27 : vector<16x256xbf16> to vector<1x16x256xbf16>
    tpu.vector_store %arg16[%c0_19, %c0_20, %c0_21], %30 {strides = array<i32>} : memref<1x16x256xbf16, #tpu.memory_space<vmem>>, vector<1x16x256xbf16>,
    %c0_22 = arith.constant 0 : index
    %c0_23 = arith.constant 0 : index
    %31 = vector.load %arg6[%c0_22, %c0_23] : memref<8x3xf32, #tpu.memory_space<vmem>>, vector<8x3xf32>
    %cst_24 = arith.constant dense<0.000000e+00> : vector<8x256xf32>
    %32 = tpu.matmul %31, %3, %cst_24 {dimension_numbers = #tpu.dot_dimension_numbers<[1], [0], [0], [1], [0, 0, 1, 1], [], []>} : vector<8x3xf32>, vector<3x256xf32>, vector<8x256xf32> -> vector<8x256xf32>
    %c0_25 = arith.constant 0 : index
    %c0_26 = arith.constant 0 : index
    %33 = vector.load %arg7[%c0_25, %c0_26] : memref<8x1xf32, #tpu.memory_space<vmem>>, vector<8x1xf32>
    %34 = vector.broadcast %33 : vector<8x1xf32> to vector<8x256xf32>
    %35 = arith.addf %32, %34 : vector<8x256xf32>
    %cst_27 = arith.constant dense<0xFF800000> : vector<256xf32>
    %36 = vector.multi_reduction <maximumf>, %35, %cst_27 [0] : vector<8x256xf32> to vector<256xf32>
    %37 = vector.shape_cast %36 : vector<256xf32> to vector<1x256xf32>
    %38 = vector.broadcast %37 : vector<1x256xf32> to vector<8x256xf32>
    %39 = arith.subf %35, %38 : vector<8x256xf32>
    %40 = math.exp %39 : vector<8x256xf32>
    %cst_28 = arith.constant dense<0.000000e+00> : vector<256xf32>
    %41 = vector.multi_reduction <add>, %40, %cst_28 [0] : vector<8x256xf32> to vector<256xf32>
    %42 = vector.shape_cast %41 : vector<256xf32> to vector<1x256xf32>
    %43 = vector.broadcast %42 : vector<1x256xf32> to vector<8x256xf32>
    %44 = arith.divf %40, %43 : vector<8x256xf32>
    %45 = arith.truncf %44 : vector<8x256xf32> to vector<8x256xbf16>
    %c0_29 = arith.constant 0 : index
    %c0_30 = arith.constant 0 : index
    %c0_31 = arith.constant 0 : index
    %46 = vector.load %arg15[%c0_29, %c0_30, %c0_31] : memref<1x8x256xbf16, #tpu.memory_space<vmem>>, vector<1x8x256xbf16>
    %47 = vector.shape_cast %46 : vector<1x8x256xbf16> to vector<8x256xbf16>
    %48 = vector.shape_cast %45 : vector<8x256xbf16> to vector<1x8x256xbf16>
    tpu.vector_store %arg15[%c0_29, %c0_30, %c0_31], %48 {strides = array<i32>} : memref<1x8x256xbf16, #tpu.memory_space<vmem>>, vector<1x8x256xbf16>,
    %c0_32 = arith.constant 0 : index
    %c0_33 = arith.constant 0 : index
    %49 = vector.load %arg8[%c0_32, %c0_33] : memref<16x8xf32, #tpu.memory_space<vmem>>, vector<16x8xf32>
    %cst_34 = arith.constant dense<0.000000e+00> : vector<16x256xf32>
    %50 = tpu.matmul %49, %44, %cst_34 {dimension_numbers = #tpu.dot_dimension_numbers<[1], [0], [0], [1], [0, 0, 1, 1], [], []>} : vector<16x8xf32>, vector<8x256xf32>, vector<16x256xf32> -> vector<16x256xf32>
    %c0_35 = arith.constant 0 : index
    %c0_36 = arith.constant 0 : index
    %51 = vector.load %arg9[%c0_35, %c0_36] : memref<16x1xf32, #tpu.memory_space<vmem>>, vector<16x1xf32>
    %52 = vector.broadcast %51 : vector<16x1xf32> to vector<16x256xf32>
    %53 = arith.addf %50, %52 : vector<16x256xf32>
    %54 = arith.truncf %53 : vector<16x256xf32> to vector<16x256xbf16>
    %c0_37 = arith.constant 0 : index
    %c0_38 = arith.constant 0 : index
    %c0_39 = arith.constant 0 : index
    %55 = vector.load %arg18[%c0_37, %c0_38, %c0_39] : memref<1x16x256xbf16, #tpu.memory_space<vmem>>, vector<1x16x256xbf16>
    %56 = vector.shape_cast %55 : vector<1x16x256xbf16> to vector<16x256xbf16>
    %57 = vector.shape_cast %54 : vector<16x256xbf16> to vector<1x16x256xbf16>
    tpu.vector_store %arg18[%c0_37, %c0_38, %c0_39], %57 {strides = array<i32>} : memref<1x16x256xbf16, #tpu.memory_space<vmem>>, vector<1x16x256xbf16>,
    %c0_40 = arith.constant 0 : index
    %c0_41 = arith.constant 0 : index
    %58 = vector.load %arg10[%c0_40, %c0_41] : memref<16x8xf32, #tpu.memory_space<vmem>>, vector<16x8xf32>
    %cst_42 = arith.constant dense<0.000000e+00> : vector<16x256xf32>
    %59 = tpu.matmul %58, %44, %cst_42 {dimension_numbers = #tpu.dot_dimension_numbers<[1], [0], [0], [1], [0, 0, 1, 1], [], []>} : vector<16x8xf32>, vector<8x256xf32>, vector<16x256xf32> -> vector<16x256xf32>
    %c0_43 = arith.constant 0 : index
    %c0_44 = arith.constant 0 : index
    %60 = vector.load %arg11[%c0_43, %c0_44] : memref<16x1xf32, #tpu.memory_space<vmem>>, vector<16x1xf32>
    %61 = vector.broadcast %60 : vector<16x1xf32> to vector<16x256xf32>
    %62 = arith.addf %59, %61 : vector<16x256xf32>
    %63 = arith.truncf %62 : vector<16x256xf32> to vector<16x256xbf16>
    %c0_45 = arith.constant 0 : index
    %c0_46 = arith.constant 0 : index
    %c0_47 = arith.constant 0 : index
    %64 = vector.load %arg19[%c0_45, %c0_46, %c0_47] : memref<1x16x256xbf16, #tpu.memory_space<vmem>>, vector<1x16x256xbf16>
    %65 = vector.shape_cast %64 : vector<1x16x256xbf16> to vector<16x256xbf16>
    %66 = vector.shape_cast %63 : vector<16x256xbf16> to vector<1x16x256xbf16>
    tpu.vector_store %arg19[%c0_45, %c0_46, %c0_47], %66 {strides = array<i32>} : memref<1x16x256xbf16, #tpu.memory_space<vmem>>, vector<1x16x256xbf16>,
    %c0_48 = arith.constant 0 : index
    %c0_49 = arith.constant 0 : index
    %67 = vector.load %arg12[%c0_48, %c0_49] : memref<3x8xf32, #tpu.memory_space<vmem>>, vector<3x8xf32>
    %cst_50 = arith.constant dense<0.000000e+00> : vector<3x256xf32>
    %68 = tpu.matmul %67, %44, %cst_50 {dimension_numbers = #tpu.dot_dimension_numbers<[1], [0], [0], [1], [0, 0, 1, 1], [], []>} : vector<3x8xf32>, vector<8x256xf32>, vector<3x256xf32> -> vector<3x256xf32>
    %c0_51 = arith.constant 0 : index
    %c0_52 = arith.constant 0 : index
    %69 = vector.load %arg13[%c0_51, %c0_52] : memref<3x1xf32, #tpu.memory_space<vmem>>, vector<3x1xf32>
    %70 = vector.broadcast %69 : vector<3x1xf32> to vector<3x256xf32>
    %71 = arith.addf %68, %70 : vector<3x256xf32>
    %72 = arith.truncf %71 : vector<3x256xf32> to vector<3x256xbf16>
    %c0_53 = arith.constant 0 : index
    %c0_54 = arith.constant 0 : index
    %c0_55 = arith.constant 0 : index
    %73 = vector.load %arg17[%c0_53, %c0_54, %c0_55] : memref<1x3x256xbf16, #tpu.memory_space<vmem>>, vector<1x3x256xbf16>
    %74 = vector.shape_cast %73 : vector<1x3x256xbf16> to vector<3x256xbf16>
    %75 = vector.shape_cast %72 : vector<3x256xbf16> to vector<1x3x256xbf16>
    tpu.vector_store %arg17[%c0_53, %c0_54, %c0_55], %75 {strides = array<i32>} : memref<1x3x256xbf16, #tpu.memory_space<vmem>>, vector<1x3x256xbf16>,
    return
  }
  func.func @transform_0(%arg0: i32, %arg1: i32) -> (i32, i32, i32) {
    %c0_i32 = arith.constant 0 : i32
    %c0_i32_0 = arith.constant 0 : i32
    return %arg0, %c0_i32, %arg1 : i32, i32, i32
  }
  func.func @transform_1(%arg0: i32, %arg1: i32) -> (i32, i32, i32) {
    %c0_i32 = arith.constant 0 : i32
    %c0_i32_0 = arith.constant 0 : i32
    return %arg0, %c0_i32, %arg1 : i32, i32, i32
  }
  func.func @transform_2(%arg0: i32, %arg1: i32) -> (i32, i32) {
    %c0_i32 = arith.constant 0 : i32
    %c0_i32_0 = arith.constant 0 : i32
    %c0_i32_1 = arith.constant 0 : i32
    return %c0_i32, %c0_i32_0 : i32, i32
  }
  func.func @transform_3(%arg0: i32, %arg1: i32) -> (i32, i32) {
    %c0_i32 = arith.constant 0 : i32
    %c0_i32_0 = arith.constant 0 : i32
    %c0_i32_1 = arith.constant 0 : i32
    return %c0_i32, %c0_i32_0 : i32, i32
  }
  func.func @transform_4(%arg0: i32, %arg1: i32) -> (i32, i32) {
    %c0_i32 = arith.constant 0 : i32
    %c0_i32_0 = arith.constant 0 : i32
    %c0_i32_1 = arith.constant 0 : i32
    return %c0_i32, %c0_i32_0 : i32, i32
  }
  func.func @transform_5(%arg0: i32, %arg1: i32) -> (i32, i32) {
    %c0_i32 = arith.constant 0 : i32
    %c0_i32_0 = arith.constant 0 : i32
    %c0_i32_1 = arith.constant 0 : i32
    return %c0_i32, %c0_i32_0 : i32, i32
  }
  func.func @transform_6(%arg0: i32, %arg1: i32) -> (i32, i32) {
    %c0_i32 = arith.constant 0 : i32
    %c0_i32_0 = arith.constant 0 : i32
    %c0_i32_1 = arith.constant 0 : i32
    return %c0_i32, %c0_i32_0 : i32, i32
  }
  func.func @transform_7(%arg0: i32, %arg1: i32) -> (i32, i32) {
    %c0_i32 = arith.constant 0 : i32
    %c0_i32_0 = arith.constant 0 : i32
    %c0_i32_1 = arith.constant 0 : i32
    return %c0_i32, %c0_i32_0 : i32, i32
  }
  func.func @transform_8(%arg0: i32, %arg1: i32) -> (i32, i32) {
    %c0_i32 = arith.constant 0 : i32
    %c0_i32_0 = arith.constant 0 : i32
    %c0_i32_1 = arith.constant 0 : i32
    return %c0_i32, %c0_i32_0 : i32, i32
  }
  func.func @transform_9(%arg0: i32, %arg1: i32) -> (i32, i32) {
    %c0_i32 = arith.constant 0 : i32
    %c0_i32_0 = arith.constant 0 : i32
    %c0_i32_1 = arith.constant 0 : i32
    return %c0_i32, %c0_i32_0 : i32, i32
  }
  func.func @transform_10(%arg0: i32, %arg1: i32) -> (i32, i32) {
    %c0_i32 = arith.constant 0 : i32
    %c0_i32_0 = arith.constant 0 : i32
    %c0_i32_1 = arith.constant 0 : i32
    return %c0_i32, %c0_i32_0 : i32, i32
  }
  func.func @transform_11(%arg0: i32, %arg1: i32) -> (i32, i32) {
    %c0_i32 = arith.constant 0 : i32
    %c0_i32_0 = arith.constant 0 : i32
    %c0_i32_1 = arith.constant 0 : i32
    return %c0_i32, %c0_i32_0 : i32, i32
  }
  func.func @transform_12(%arg0: i32, %arg1: i32) -> (i32, i32, i32) {
    %c0_i32 = arith.constant 0 : i32
    %c0_i32_0 = arith.constant 0 : i32
    return %arg0, %c0_i32, %arg1 : i32, i32, i32
  }
  func.func @transform_13(%arg0: i32, %arg1: i32) -> (i32, i32, i32) {
    %c0_i32 = arith.constant 0 : i32
    %c0_i32_0 = arith.constant 0 : i32
    return %arg0, %c0_i32, %arg1 : i32, i32, i32
  }
  func.func @transform_14(%arg0: i32, %arg1: i32) -> (i32, i32, i32) {
    %c0_i32 = arith.constant 0 : i32
    %c0_i32_0 = arith.constant 0 : i32
    return %arg0, %c0_i32, %arg1 : i32, i32, i32
  }
  func.func @transform_15(%arg0: i32, %arg1: i32) -> (i32, i32, i32) {
    %c0_i32 = arith.constant 0 : i32
    %c0_i32_0 = arith.constant 0 : i32
    return %arg0, %c0_i32, %arg1 : i32, i32, i32
  }
  func.func @transform_16(%arg0: i32, %arg1: i32) -> (i32, i32, i32) {
    %c0_i32 = arith.constant 0 : i32
    %c0_i32_0 = arith.constant 0 : i32
    return %arg0, %c0_i32, %arg1 : i32, i32, i32
  }
  func.func @transform_17(%arg0: i32, %arg1: i32) -> (i32, i32, i32) {
    %c0_i32 = arith.constant 0 : i32
    %c0_i32_0 = arith.constant 0 : i32
    return %arg0, %c0_i32, %arg1 : i32, i32, i32
  }
}

</mosaic_0001>

<llo_original>
// kernel: generator_forward.1
$region0: #{generator_forward.1}
  #allocation0 [shape = 'u32[]', space=smem, size = 0x4, offset = 0x4, fixed_abs, tag = 'smem constant byte address 0x4 - core index']
  #allocation1 [shape = 'u32[72,128]{1,0:T(1,128)}', space=vmem, size = 0x9000, scoped, tag = 'internal scratch']
  %s0 = inlined_call_operand.vmem [shape: f32[2,16,256], index: 0, kind: input, shape index: {}]
  %s1 = inlined_call_operand.vmem [shape: f32[2,3,256], index: 1, kind: input, shape index: {}]
  %s2 = inlined_call_operand.vmem [shape: f32[8,16], index: 2, kind: input, shape index: {}]
  %s3 = inlined_call_operand.vmem [shape: f32[8,1], index: 3, kind: input, shape index: {}]
  %s4 = inlined_call_operand.vmem [shape: f32[8,3], index: 4, kind: input, shape index: {}]
  %s5 = inlined_call_operand.vmem [shape: f32[8,1], index: 5, kind: input, shape index: {}]
  %s6 = inlined_call_operand.vmem [shape: f32[16,8], index: 6, kind: input, shape index: {}]
  %s7 = inlined_call_operand.vmem [shape: f32[16,1], index: 7, kind: input, shape index: {}]
  %s8 = inlined_call_operand.vmem [shape: f32[16,8], index: 8, kind: input, shape index: {}]
  %s9 = inlined_call_operand.vmem [shape: f32[16,1], index: 9, kind: input, shape index: {}]
  %s10 = inlined_call_operand.vmem [shape: f32[3,8], index: 10, kind: input, shape index: {}]
  %s11 = inlined_call_operand.vmem [shape: f32[3,1], index: 11, kind: input, shape index: {}]
  %s12 = inlined_call_operand.vmem [shape: bf16[2,8,256], index: 12, kind: output, shape index: {0}]
  %s13 = inlined_call_operand.vmem [shape: bf16[2,8,256], index: 13, kind: output, shape index: {1}]
  %s14 = inlined_call_operand.vmem [shape: bf16[2,16,256], index: 14, kind: output, shape index: {2}]
  %s15 = inlined_call_operand.vmem [shape: bf16[2,3,256], index: 15, kind: output, shape index: {3}]
  %s16 = inlined_call_operand.vmem [shape: bf16[2,16,256], index: 16, kind: output, shape index: {4}]
  %s17 = inlined_call_operand.vmem [shape: bf16[2,16,256], index: 17, kind: output, shape index: {5}]
  %18 = xla_tuple %s12, %s13, %s14, %s15, %s16, %s17
  %s19 = sld [smem:[#allocation0]]
  $region121: #{generator_forward.1} parent=0
    _
  %s21 = ssub.s32 1, %s19
  %s22 = scalar_select 0, %s21, %s19
  loop: start=0, step=1, limit=4
  $region2: #{generator_forward.1} parent=0 // loop_pre_header
    _
  $region3: #{generator_forward.1} parent=0 // loop_header
    %s24 = sphi 0, %s28
    %p25 = scmp.ge.s32.totalorder %s24, 4
    %s31 = sphi 0, %s43
    %s32 = sphi 0, %s39
    %s33 = sphi 0, %s31
    %s34 = sphi 0, %s32
    %s35 = sphi 0, %s33
    %s36 = sphi 0, %s34
    %s48 = sphi 0, %s50
    %s51 = sphi 0, %s48
    %s52 = sphi 0, %s51
    %s68 = sphi 0, %s52
    %s76 = sphi 0, %s78
    %s79 = sphi 0, %s76
    %s80 = sphi 0, %s79
    %s96 = sphi 0, %s80
    %s100 = sphi 0, %s100
    %s102 = sphi 0, %s100
    %s103 = sphi 0, %s102
    %s117 = sphi 0, %s103
    %s121 = sphi 0, %s121
    %s123 = sphi 0, %s121
    %s124 = sphi 0, %s123
    %s138 = sphi 0, %s124
    %s142 = sphi 0, %s142
    %s144 = sphi 0, %s142
    %s145 = sphi 0, %s144
    %s159 = sphi 0, %s145
    %s163 = sphi 0, %s163
    %s165 = sphi 0, %s163
    %s166 = sphi 0, %s165
    %s180 = sphi 0, %s166
    %s184 = sphi 0, %s184
    %s186 = sphi 0, %s184
    %s187 = sphi 0, %s186
    %s201 = sphi 0, %s187
    %s205 = sphi 0, %s205
    %s207 = sphi 0, %s205
    %s208 = sphi 0, %s207
    %s222 = sphi 0, %s208
    %s226 = sphi 0, %s226
    %s228 = sphi 0, %s226
    %s229 = sphi 0, %s228
    %s243 = sphi 0, %s229
    %s247 = sphi 0, %s247
    %s249 = sphi 0, %s247
    %s250 = sphi 0, %s249
    %s264 = sphi 0, %s250
    %s268 = sphi 0, %s268
    %s270 = sphi 0, %s268
    %s271 = sphi 0, %s270
    %s285 = sphi 0, %s271
    %s289 = sphi 0, %s289
    %s291 = sphi 0, %s289
    %s292 = sphi 0, %s291
    %s306 = sphi 0, %s292
    %s314 = sphi 0, %s316
    %s317 = sphi 0, %s314
    %s318 = sphi 0, %s317
    %s334 = sphi 0, %s318
    %s342 = sphi 0, %s344
    %s345 = sphi 0, %s342
    %s346 = sphi 0, %s345
    %s362 = sphi 0, %s346
    %s370 = sphi 0, %s372
    %s373 = sphi 0, %s370
    %s374 = sphi 0, %s373
    %s390 = sphi 0, %s374
    %s398 = sphi 0, %s400
    %s401 = sphi 0, %s398
    %s402 = sphi 0, %s401
    %s418 = sphi 0, %s402
    %s426 = sphi 0, %s428
    %s429 = sphi 0, %s426
    %s430 = sphi 0, %s429
    %s446 = sphi 0, %s430
    %s454 = sphi 0, %s456
    %s457 = sphi 0, %s454
    %s458 = sphi 0, %s457
    %s474 = sphi 0, %s458
  $region4: #{generator_forward.1} parent=0 // loop_header_branch
    %27 = sbr.rel (%p25) target = $region8
  $region5: #{generator_forward.1} parent=0 // loop_body
    %s29 = ssub.s32 %s24, 1
    %s30 = ssub.s32 %s24, 2
    %s37 = sadd.s32 1, %s32
    %p38 = scmp.ge.s32.totalorder %s37, 1
    %s39 = scalar_select %p38, 0, %s37
    %s40 = sadd.s32 1, %s31
    %s41 = scalar_select %p38, %s40, %s31
    %p42 = scmp.ge.s32.totalorder %s41, 2
    %s43 = scalar_select %p42, 0, %s41
    %s44 = ssub.s32 %s31, %s43
    %s45 = ssub.s32 %s32, %s39
    %s46 = sor.u32 %s44, %s45
    %p47 = scmp.eq.s32.totalorder %s46, 0
    %s49 = sadd.s32 %s48, 1
    %s50 = scalar_select %p47, %s48, %s49
    %p53 = pneg %p47
    %p54 = scmp.eq.s32.totalorder %s24, 1
    %p55 = por %p53, %p54
    %p56 = scmp.ne.s32.totalorder %s48, %s51
    %p57 = scmp.eq.s32.totalorder %s24, 0
    %p58 = por %p56, %p57
    %p59 = scmp.ne.s32.totalorder %s48, %s51
    %p60 = scmp.eq.s32.totalorder %s29, 1
    %p61 = por %p59, %p60
    %p62 = scmp.ne.s32.totalorder %s51, %s52
    %p63 = scmp.eq.s32.totalorder %s29, 0
    %p64 = por %p62, %p63
    %p65 = scmp.ne.s32.totalorder %s51, %s52
    %p66 = scmp.eq.s32.totalorder %s30, 1
    %p67 = por %p65, %p66
    %p69 = scmp.ne.s32.totalorder %s52, %s68
    %p70 = scmp.eq.s32.totalorder %s30, 0
    %p71 = por %p69, %p70
    %s72 = ssub.s32 %s31, %s43
    %s73 = ssub.s32 %s32, %s39
    %s74 = sor.u32 %s72, %s73
    %p75 = scmp.eq.s32.totalorder %s74, 0
    %s77 = sadd.s32 %s76, 1
    %s78 = scalar_select %p75, %s76, %s77
    %p81 = pneg %p75
    %p82 = scmp.eq.s32.totalorder %s24, 1
    %p83 = por %p81, %p82
    %p84 = scmp.ne.s32.totalorder %s76, %s79
    %p85 = scmp.eq.s32.totalorder %s24, 0
    %p86 = por %p84, %p85
    %p87 = scmp.ne.s32.totalorder %s76, %s79
    %p88 = scmp.eq.s32.totalorder %s29, 1
    %p89 = por %p87, %p88
    %p90 = scmp.ne.s32.totalorder %s79, %s80
    %p91 = scmp.eq.s32.totalorder %s29, 0
    %p92 = por %p90, %p91
    %p93 = scmp.ne.s32.totalorder %s79, %s80
    %p94 = scmp.eq.s32.totalorder %s30, 1
    %p95 = por %p93, %p94
    %p97 = scmp.ne.s32.totalorder %s80, %s96
    %p98 = scmp.eq.s32.totalorder %s30, 0
    %p99 = por %p97, %p98
    %s101 = sadd.s32 %s100, 1
    %p104 = scmp.eq.s32.totalorder %s24, 1
    %p105 = scmp.ne.s32.totalorder %s100, %s102
    %p106 = scmp.eq.s32.totalorder %s24, 0
    %p107 = por %p105, %p106
    %p108 = scmp.ne.s32.totalorder %s100, %s102
    %p109 = scmp.eq.s32.totalorder %s29, 1
    %p110 = por %p108, %p109
    %p111 = scmp.ne.s32.totalorder %s102, %s103
    %p112 = scmp.eq.s32.totalorder %s29, 0
    %p113 = por %p111, %p112
    %p114 = scmp.ne.s32.totalorder %s102, %s103
    %p115 = scmp.eq.s32.totalorder %s30, 1
    %p116 = por %p114, %p115
    %p118 = scmp.ne.s32.totalorder %s103, %s117
    %p119 = scmp.eq.s32.totalorder %s30, 0
    %p120 = por %p118, %p119
    %s122 = sadd.s32 %s121, 1
    %p125 = scmp.eq.s32.totalorder %s24, 1
    %p126 = scmp.ne.s32.totalorder %s121, %s123
    %p127 = scmp.eq.s32.totalorder %s24, 0
    %p128 = por %p126, %p127
    %p129 = scmp.ne.s32.totalorder %s121, %s123
    %p130 = scmp.eq.s32.totalorder %s29, 1
    %p131 = por %p129, %p130
    %p132 = scmp.ne.s32.totalorder %s123, %s124
    %p133 = scmp.eq.s32.totalorder %s29, 0
    %p134 = por %p132, %p133
    %p135 = scmp.ne.s32.totalorder %s123, %s124
    %p136 = scmp.eq.s32.totalorder %s30, 1
    %p137 = por %p135, %p136
    %p139 = scmp.ne.s32.totalorder %s124, %s138
    %p140 = scmp.eq.s32.totalorder %s30, 0
    %p141 = por %p139, %p140
    %s143 = sadd.s32 %s142, 1
    %p146 = scmp.eq.s32.totalorder %s24, 1
    %p147 = scmp.ne.s32.totalorder %s142, %s144
    %p148 = scmp.eq.s32.totalorder %s24, 0
    %p149 = por %p147, %p148
    %p150 = scmp.ne.s32.totalorder %s142, %s144
    %p151 = scmp.eq.s32.totalorder %s29, 1
    %p152 = por %p150, %p151
    %p153 = scmp.ne.s32.totalorder %s144, %s145
    %p154 = scmp.eq.s32.totalorder %s29, 0
    %p155 = por %p153, %p154
    %p156 = scmp.ne.s32.totalorder %s144, %s145
    %p157 = scmp.eq.s32.totalorder %s30, 1
    %p158 = por %p156, %p157
    %p160 = scmp.ne.s32.totalorder %s145, %s159
    %p161 = scmp.eq.s32.totalorder %s30, 0
    %p162 = por %p160, %p161
    %s164 = sadd.s32 %s163, 1
    %p167 = scmp.eq.s32.totalorder %s24, 1
    %p168 = scmp.ne.s32.totalorder %s163, %s165
    %p169 = scmp.eq.s32.totalorder %s24, 0
    %p170 = por %p168, %p169
    %p171 = scmp.ne.s32.totalorder %s163, %s165
    %p172 = scmp.eq.s32.totalorder %s29, 1
    %p173 = por %p171, %p172
    %p174 = scmp.ne.s32.totalorder %s165, %s166
    %p175 = scmp.eq.s32.totalorder %s29, 0
    %p176 = por %p174, %p175
    %p177 = scmp.ne.s32.totalorder %s165, %s166
    %p178 = scmp.eq.s32.totalorder %s30, 1
    %p179 = por %p177, %p178
    %p181 = scmp.ne.s32.totalorder %s166, %s180
    %p182 = scmp.eq.s32.totalorder %s30, 0
    %p183 = por %p181, %p182
    %s185 = sadd.s32 %s184, 1
    %p188 = scmp.eq.s32.totalorder %s24, 1
    %p189 = scmp.ne.s32.totalorder %s184, %s186
    %p190 = scmp.eq.s32.totalorder %s24, 0
    %p191 = por %p189, %p190
    %p192 = scmp.ne.s32.totalorder %s184, %s186
    %p193 = scmp.eq.s32.totalorder %s29, 1
    %p194 = por %p192, %p193
    %p195 = scmp.ne.s32.totalorder %s186, %s187
    %p196 = scmp.eq.s32.totalorder %s29, 0
    %p197 = por %p195, %p196
    %p198 = scmp.ne.s32.totalorder %s186, %s187
    %p199 = scmp.eq.s32.totalorder %s30, 1
    %p200 = por %p198, %p199
    %p202 = scmp.ne.s32.totalorder %s187, %s201
    %p203 = scmp.eq.s32.totalorder %s30, 0
    %p204 = por %p202, %p203
    %s206 = sadd.s32 %s205, 1
    %p209 = scmp.eq.s32.totalorder %s24, 1
    %p210 = scmp.ne.s32.totalorder %s205, %s207
    %p211 = scmp.eq.s32.totalorder %s24, 0
    %p212 = por %p210, %p211
    %p213 = scmp.ne.s32.totalorder %s205, %s207
    %p214 = scmp.eq.s32.totalorder %s29, 1
    %p215 = por %p213, %p214
    %p216 = scmp.ne.s32.totalorder %s207, %s208
    %p217 = scmp.eq.s32.totalorder %s29, 0
    %p218 = por %p216, %p217
    %p219 = scmp.ne.s32.totalorder %s207, %s208
    %p220 = scmp.eq.s32.totalorder %s30, 1
    %p221 = por %p219, %p220
    %p223 = scmp.ne.s32.totalorder %s208, %s222
    %p224 = scmp.eq.s32.totalorder %s30, 0
    %p225 = por %p223, %p224
    %s227 = sadd.s32 %s226, 1
    %p230 = scmp.eq.s32.totalorder %s24, 1
    %p231 = scmp.ne.s32.totalorder %s226, %s228
    %p232 = scmp.eq.s32.totalorder %s24, 0
    %p233 = por %p231, %p232
    %p234 = scmp.ne.s32.totalorder %s226, %s228
    %p235 = scmp.eq.s32.totalorder %s29, 1
    %p236 = por %p234, %p235
    %p237 = scmp.ne.s32.totalorder %s228, %s229
    %p238 = scmp.eq.s32.totalorder %s29, 0
    %p239 = por %p237, %p238
    %p240 = scmp.ne.s32.totalorder %s228, %s229
    %p241 = scmp.eq.s32.totalorder %s30, 1
    %p242 = por %p240, %p241
    %p244 = scmp.ne.s32.totalorder %s229, %s243
    %p245 = scmp.eq.s32.totalorder %s30, 0
    %p246 = por %p244, %p245
    %s248 = sadd.s32 %s247, 1
    %p251 = scmp.eq.s32.totalorder %s24, 1
    %p252 = scmp.ne.s32.totalorder %s247, %s249
    %p253 = scmp.eq.s32.totalorder %s24, 0
    %p254 = por %p252, %p253
    %p255 = scmp.ne.s32.totalorder %s247, %s249
    %p256 = scmp.eq.s32.totalorder %s29, 1
    %p257 = por %p255, %p256
    %p258 = scmp.ne.s32.totalorder %s249, %s250
    %p259 = scmp.eq.s32.totalorder %s29, 0
    %p260 = por %p258, %p259
    %p261 = scmp.ne.s32.totalorder %s249, %s250
    %p262 = scmp.eq.s32.totalorder %s30, 1
    %p263 = por %p261, %p262
    %p265 = scmp.ne.s32.totalorder %s250, %s264
    %p266 = scmp.eq.s32.totalorder %s30, 0
    %p267 = por %p265, %p266
    %s269 = sadd.s32 %s268, 1
    %p272 = scmp.eq.s32.totalorder %s24, 1
    %p273 = scmp.ne.s32.totalorder %s268, %s270
    %p274 = scmp.eq.s32.totalorder %s24, 0
    %p275 = por %p273, %p274
    %p276 = scmp.ne.s32.totalorder %s268, %s270
    %p277 = scmp.eq.s32.totalorder %s29, 1
    %p278 = por %p276, %p277
    %p279 = scmp.ne.s32.totalorder %s270, %s271
    %p280 = scmp.eq.s32.totalorder %s29, 0
    %p281 = por %p279, %p280
    %p282 = scmp.ne.s32.totalorder %s270, %s271
    %p283 = scmp.eq.s32.totalorder %s30, 1
    %p284 = por %p282, %p283
    %p286 = scmp.ne.s32.totalorder %s271, %s285
    %p287 = scmp.eq.s32.totalorder %s30, 0
    %p288 = por %p286, %p287
    %s290 = sadd.s32 %s289, 1
    %p293 = scmp.eq.s32.totalorder %s24, 1
    %p294 = scmp.ne.s32.totalorder %s289, %s291
    %p295 = scmp.eq.s32.totalorder %s24, 0
    %p296 = por %p294, %p295
    %p297 = scmp.ne.s32.totalorder %s289, %s291
    %p298 = scmp.eq.s32.totalorder %s29, 1
    %p299 = por %p297, %p298
    %p300 = scmp.ne.s32.totalorder %s291, %s292
    %p301 = scmp.eq.s32.totalorder %s29, 0
    %p302 = por %p300, %p301
    %p303 = scmp.ne.s32.totalorder %s291, %s292
    %p304 = scmp.eq.s32.totalorder %s30, 1
    %p305 = por %p303, %p304
    %p307 = scmp.ne.s32.totalorder %s292, %s306
    %p308 = scmp.eq.s32.totalorder %s30, 0
    %p309 = por %p307, %p308
    %s310 = ssub.s32 %s31, %s43
    %s311 = ssub.s32 %s32, %s39
    %s312 = sor.u32 %s310, %s311
    %p313 = scmp.eq.s32.totalorder %s312, 0
    %s315 = sadd.s32 %s314, 1
    %s316 = scalar_select %p313, %s314, %s315
    %p319 = pneg %p313
    %p320 = scmp.eq.s32.totalorder %s24, 1
    %p321 = por %p319, %p320
    %p322 = scmp.ne.s32.totalorder %s314, %s317
    %p323 = scmp.eq.s32.totalorder %s24, 0
    %p324 = por %p322, %p323
    %p325 = scmp.ne.s32.totalorder %s314, %s317
    %p326 = scmp.eq.s32.totalorder %s29, 1
    %p327 = por %p325, %p326
    %p328 = scmp.ne.s32.totalorder %s317, %s318
    %p329 = scmp.eq.s32.totalorder %s29, 0
    %p330 = por %p328, %p329
    %p331 = scmp.ne.s32.totalorder %s317, %s318
    %p332 = scmp.eq.s32.totalorder %s30, 1
    %p333 = por %p331, %p332
    %p335 = scmp.ne.s32.totalorder %s318, %s334
    %p336 = scmp.eq.s32.totalorder %s30, 0
    %p337 = por %p335, %p336
    %s338 = ssub.s32 %s31, %s43
    %s339 = ssub.s32 %s32, %s39
    %s340 = sor.u32 %s338, %s339
    %p341 = scmp.eq.s32.totalorder %s340, 0
    %s343 = sadd.s32 %s342, 1
    %s344 = scalar_select %p341, %s342, %s343
    %p347 = pneg %p341
    %p348 = scmp.eq.s32.totalorder %s24, 1
    %p349 = por %p347, %p348
    %p350 = scmp.ne.s32.totalorder %s342, %s345
    %p351 = scmp.eq.s32.totalorder %s24, 0
    %p352 = por %p350, %p351
    %p353 = scmp.ne.s32.totalorder %s342, %s345
    %p354 = scmp.eq.s32.totalorder %s29, 1
    %p355 = por %p353, %p354
    %p356 = scmp.ne.s32.totalorder %s345, %s346
    %p357 = scmp.eq.s32.totalorder %s29, 0
    %p358 = por %p356, %p357
    %p359 = scmp.ne.s32.totalorder %s345, %s346
    %p360 = scmp.eq.s32.totalorder %s30, 1
    %p361 = por %p359, %p360
    %p363 = scmp.ne.s32.totalorder %s346, %s362
    %p364 = scmp.eq.s32.totalorder %s30, 0
    %p365 = por %p363, %p364
    %s366 = ssub.s32 %s31, %s43
    %s367 = ssub.s32 %s32, %s39
    %s368 = sor.u32 %s366, %s367
    %p369 = scmp.eq.s32.totalorder %s368, 0
    %s371 = sadd.s32 %s370, 1
    %s372 = scalar_select %p369, %s370, %s371
    %p375 = pneg %p369
    %p376 = scmp.eq.s32.totalorder %s24, 1
    %p377 = por %p375, %p376
    %p378 = scmp.ne.s32.totalorder %s370, %s373
    %p379 = scmp.eq.s32.totalorder %s24, 0
    %p380 = por %p378, %p379
    %p381 = scmp.ne.s32.totalorder %s370, %s373
    %p382 = scmp.eq.s32.totalorder %s29, 1
    %p383 = por %p381, %p382
    %p384 = scmp.ne.s32.totalorder %s373, %s374
    %p385 = scmp.eq.s32.totalorder %s29, 0
    %p386 = por %p384, %p385
    %p387 = scmp.ne.s32.totalorder %s373, %s374
    %p388 = scmp.eq.s32.totalorder %s30, 1
    %p389 = por %p387, %p388
    %p391 = scmp.ne.s32.totalorder %s374, %s390
    %p392 = scmp.eq.s32.totalorder %s30, 0
    %p393 = por %p391, %p392
    %s394 = ssub.s32 %s31, %s43
    %s395 = ssub.s32 %s32, %s39
    %s396 = sor.u32 %s394, %s395
    %p397 = scmp.eq.s32.totalorder %s396, 0
    %s399 = sadd.s32 %s398, 1
    %s400 = scalar_select %p397, %s398, %s399
    %p403 = pneg %p397
    %p404 = scmp.eq.s32.totalorder %s24, 1
    %p405 = por %p403, %p404
    %p406 = scmp.ne.s32.totalorder %s398, %s401
    %p407 = scmp.eq.s32.totalorder %s24, 0
    %p408 = por %p406, %p407
    %p409 = scmp.ne.s32.totalorder %s398, %s401
    %p410 = scmp.eq.s32.totalorder %s29, 1
    %p411 = por %p409, %p410
    %p412 = scmp.ne.s32.totalorder %s401, %s402
    %p413 = scmp.eq.s32.totalorder %s29, 0
    %p414 = por %p412, %p413
    %p415 = scmp.ne.s32.totalorder %s401, %s402
    %p416 = scmp.eq.s32.totalorder %s30, 1
    %p417 = por %p415, %p416
    %p419 = scmp.ne.s32.totalorder %s402, %s418
    %p420 = scmp.eq.s32.totalorder %s30, 0
    %p421 = por %p419, %p420
    %s422 = ssub.s32 %s31, %s43
    %s423 = ssub.s32 %s32, %s39
    %s424 = sor.u32 %s422, %s423
    %p425 = scmp.eq.s32.totalorder %s424, 0
    %s427 = sadd.s32 %s426, 1
    %s428 = scalar_select %p425, %s426, %s427
    %p431 = pneg %p425
    %p432 = scmp.eq.s32.totalorder %s24, 1
    %p433 = por %p431, %p432
    %p434 = scmp.ne.s32.totalorder %s426, %s429
    %p435 = scmp.eq.s32.totalorder %s24, 0
    %p436 = por %p434, %p435
    %p437 = scmp.ne.s32.totalorder %s426, %s429
    %p438 = scmp.eq.s32.totalorder %s29, 1
    %p439 = por %p437, %p438
    %p440 = scmp.ne.s32.totalorder %s429, %s430
    %p441 = scmp.eq.s32.totalorder %s29, 0
    %p442 = por %p440, %p441
    %p443 = scmp.ne.s32.totalorder %s429, %s430
    %p444 = scmp.eq.s32.totalorder %s30, 1
    %p445 = por %p443, %p444
    %p447 = scmp.ne.s32.totalorder %s430, %s446
    %p448 = scmp.eq.s32.totalorder %s30, 0
    %p449 = por %p447, %p448
    %s450 = ssub.s32 %s31, %s43
    %s451 = ssub.s32 %s32, %s39
    %s452 = sor.u32 %s450, %s451
    %p453 = scmp.eq.s32.totalorder %s452, 0
    %s455 = sadd.s32 %s454, 1
    %s456 = scalar_select %p453, %s454, %s455
    %p459 = pneg %p453
    %p460 = scmp.eq.s32.totalorder %s24, 1
    %p461 = por %p459, %p460
    %p462 = scmp.ne.s32.totalorder %s454, %s457
    %p463 = scmp.eq.s32.totalorder %s24, 0
    %p464 = por %p462, %p463
    %p465 = scmp.ne.s32.totalorder %s454, %s457
    %p466 = scmp.eq.s32.totalorder %s29, 1
    %p467 = por %p465, %p466
    %p468 = scmp.ne.s32.totalorder %s457, %s458
    %p469 = scmp.eq.s32.totalorder %s29, 0
    %p470 = por %p468, %p469
    %p471 = scmp.ne.s32.totalorder %s457, %s458
    %p472 = scmp.eq.s32.totalorder %s30, 1
    %p473 = por %p471, %p472
    %p475 = scmp.ne.s32.totalorder %s458, %s474
    %p476 = scmp.eq.s32.totalorder %s30, 0
    %p477 = por %p475, %p476
    %p478 = scmp.le.s32.totalorder 1, %s24
    %p479 = scmp.lt.s32.totalorder %s24, 3
    %p480 = pnand %p478, %p479
    %p481 = pneg %p480
    // Predicated region
    $region9: #{generator_forward.1} parent=5 // pred_check
      _
    $region10: #{generator_forward.1} parent=5 // pred_check_branch
      %483 = sbr.rel (%p480) target = $region12
    $region11: #{generator_forward.1} parent=5 // pred_region
      %s484 = ssub.s32 %s24, 1
      // Predicated region
      $region13: #{generator_forward.1} parent=11 // pred_check
        %p485 = pneg %p113
      $region14: #{generator_forward.1} parent=11 // pred_check_branch
        %487 = sbr.rel (%p485) target = $region16
      $region15: #{generator_forward.1} parent=11 // pred_region
        _
      $region16: #{generator_forward.1} parent=11 // pred_fallthru
        _
      // Predicated region
      $region17: #{generator_forward.1} parent=11 // pred_check
        %p488 = pneg %p134
      $region18: #{generator_forward.1} parent=11 // pred_check_branch
        %490 = sbr.rel (%p488) target = $region20
      $region19: #{generator_forward.1} parent=11 // pred_region
        _
      $region20: #{generator_forward.1} parent=11 // pred_fallthru
        _
      // Predicated region
      $region21: #{generator_forward.1} parent=11 // pred_check
        %p491 = pneg %p155
      $region22: #{generator_forward.1} parent=11 // pred_check_branch
        %493 = sbr.rel (%p491) target = $region24
      $region23: #{generator_forward.1} parent=11 // pred_region
        _
      $region24: #{generator_forward.1} parent=11 // pred_fallthru
        _
      // Predicated region
      $region25: #{generator_forward.1} parent=11 // pred_check
        %p494 = pneg %p176
      $region26: #{generator_forward.1} parent=11 // pred_check_branch
        %496 = sbr.rel (%p494) target = $region28
      $region27: #{generator_forward.1} parent=11 // pred_region
        _
      $region28: #{generator_forward.1} parent=11 // pred_fallthru
        _
      // Predicated region
      $region29: #{generator_forward.1} parent=11 // pred_check
        %p497 = pneg %p197
      $region30: #{generator_forward.1} parent=11 // pred_check_branch
        %499 = sbr.rel (%p497) target = $region32
      $region31: #{generator_forward.1} parent=11 // pred_region
        _
      $region32: #{generator_forward.1} parent=11 // pred_fallthru
        _
      // Predicated region
      $region33: #{generator_forward.1} parent=11 // pred_check
        %p500 = pneg %p218
      $region34: #{generator_forward.1} parent=11 // pred_check_branch
        %502 = sbr.rel (%p500) target = $region36
      $region35: #{generator_forward.1} parent=11 // pred_region
        _
      $region36: #{generator_forward.1} parent=11 // pred_fallthru
        _
      // Predicated region
      $region37: #{generator_forward.1} parent=11 // pred_check
        %p503 = pneg %p239
      $region38: #{generator_forward.1} parent=11 // pred_check_branch
        %505 = sbr.rel (%p503) target = $region40
      $region39: #{generator_forward.1} parent=11 // pred_region
        _
      $region40: #{generator_forward.1} parent=11 // pred_fallthru
        _
      // Predicated region
      $region41: #{generator_forward.1} parent=11 // pred_check
        %p506 = pneg %p260
      $region42: #{generator_forward.1} parent=11 // pred_check_branch
        %508 = sbr.rel (%p506) target = $region44
      $region43: #{generator_forward.1} parent=11 // pred_region
        _
      $region44: #{generator_forward.1} parent=11 // pred_fallthru
        _
      // Predicated region
      $region45: #{generator_forward.1} parent=11 // pred_check
        %p509 = pneg %p281
      $region46: #{generator_forward.1} parent=11 // pred_check_branch
        %511 = sbr.rel (%p509) target = $region48
      $region47: #{generator_forward.1} parent=11 // pred_region
        _
      $region48: #{generator_forward.1} parent=11 // pred_fallthru
        _
      // Predicated region
      $region49: #{generator_forward.1} parent=11 // pred_check
        %p512 = pneg %p302
      $region50: #{generator_forward.1} parent=11 // pred_check_branch
        %514 = sbr.rel (%p512) target = $region52
      $region51: #{generator_forward.1} parent=11 // pred_region
        _
      $region52: #{generator_forward.1} parent=11 // pred_fallthru
        _
    $region12: #{generator_forward.1} parent=5 // pred_fallthru
      _
    %p515 = scmp.lt.s32.totalorder %s24, 2
    // Predicated region
    $region53: #{generator_forward.1} parent=5 // pred_check
      %p516 = pneg %p515
    $region54: #{generator_forward.1} parent=5 // pred_check_branch
      %518 = sbr.rel (%p516) target = $region56
    $region55: #{generator_forward.1} parent=5 // pred_region
      // Predicated region
      $region57: #{generator_forward.1} parent=55 // pred_check
        %p519 = pneg %p58
      $region58: #{generator_forward.1} parent=55 // pred_check_branch
        %521 = sbr.rel (%p519) target = $region60
      $region59: #{generator_forward.1} parent=55 // pred_region
        %s522 = smul.u32 2, %s32
        %p523 = scmp.lt.s32.totalorder %s31, 1
        %s524 = scalar_select %p523, %s31, 1
        %p525 = scmp.lt.s32.totalorder %s522, 1
        %s526 = scalar_select %p525, %s522, 1
        %s527 = smul.addr %s524, 4
        %s528 = sadd.s32 %s526, %s527
        %s529 = smul.addr %s528, 8
        %s530 = scalar_lea.vmem %s0, %s529
        %s531 = smul.u32 2, %s32
      $region60: #{generator_forward.1} parent=55 // pred_fallthru
        _
      // Predicated region
      $region61: #{generator_forward.1} parent=55 // pred_check
        %p532 = pneg %p86
      $region62: #{generator_forward.1} parent=55 // pred_check_branch
        %534 = sbr.rel (%p532) target = $region64
      $region63: #{generator_forward.1} parent=55 // pred_region
        %s535 = smul.u32 2, %s32
        %p536 = scmp.lt.s32.totalorder %s31, 1
        %s537 = scalar_select %p536, %s31, 1
        %p538 = scmp.lt.s32.totalorder %s535, 1
        %s539 = scalar_select %p538, %s535, 1
        %s540 = smul.addr %s537, 2
        %s541 = sadd.s32 %s539, %s540
        %s542 = smul.addr %s541, 4
        %s543 = scalar_lea.vmem %s1, %s542
        %s544 = smul.u32 2, %s32
      $region64: #{generator_forward.1} parent=55 // pred_fallthru
        _
    $region56: #{generator_forward.1} parent=5 // pred_fallthru
      _
    %p545 = scmp.le.s32.totalorder 1, %s24
    %p546 = scmp.lt.s32.totalorder %s24, 3
    %p547 = pnand %p545, %p546
    %p548 = pneg %p547
    // Predicated region
    $region65: #{generator_forward.1} parent=5 // pred_check
      _
    $region66: #{generator_forward.1} parent=5 // pred_check_branch
      %550 = sbr.rel (%p547) target = $region68
    $region67: #{generator_forward.1} parent=5 // pred_region
      %s551 = ssub.s32 %s24, 1
      %s552 = smul.u32 2, %s34
      %p553 = scmp.lt.s32.totalorder %s33, 1
      %s554 = scalar_select %p553, %s33, 1
      %p555 = scmp.lt.s32.totalorder %s552, 1
      %s556 = scalar_select %p555, %s552, 1
      %s557 = smul.addr %s554, 4
      %s558 = sadd.s32 %s556, %s557
      %s559 = smul.addr %s558, 8
      %s560 = scalar_lea.vmem %s0, %s559
      %p561 = pneg %p64
      %p562 = pneg %p61
      %s563 = smul.u32 2, %s34
      %p564 = scmp.lt.s32.totalorder %s33, 1
      %s565 = scalar_select %p564, %s33, 1
      %p566 = scmp.lt.s32.totalorder %s563, 1
      %s567 = scalar_select %p566, %s563, 1
      %s568 = smul.addr %s565, 2
      %s569 = sadd.s32 %s567, %s568
      %s570 = smul.addr %s569, 4
      %s571 = scalar_lea.vmem %s1, %s570
      %p572 = pneg %p92
      %p573 = pneg %p89
      %p574 = pneg %p113
      %p575 = pneg %p110
      %p576 = pneg %p134
      %p577 = pneg %p131
      %p578 = pneg %p155
      %p579 = pneg %p152
      %p580 = pneg %p176
      %p581 = pneg %p173
      %p582 = pneg %p197
      %p583 = pneg %p194
      %p584 = pneg %p218
      %p585 = pneg %p215
      %p586 = pneg %p239
      %p587 = pneg %p236
      %p588 = pneg %p260
      %p589 = pneg %p257
      %p590 = pneg %p281
      %p591 = pneg %p278
      %p592 = pneg %p302
      %p593 = pneg %p299
      %p594 = pneg %p330
      %p595 = pneg %p327
      %s596 = smul.u32 2, %s34
      %p597 = scmp.lt.s32.totalorder %s33, 1
      %s598 = scalar_select %p597, %s33, 1
      %p599 = scmp.lt.s32.totalorder %s596, 1
      %s600 = scalar_select %p599, %s596, 1
      %s601 = smul.addr %s598, 2
      %s602 = sadd.s32 %s600, %s601
      %s603 = smul.addr %s602, 4
      %s604 = scalar_lea.vmem %s12, %s603
      %p605 = pneg %p358
      %p606 = pneg %p355
      %s607 = smul.u32 2, %s34
      %p608 = scmp.lt.s32.totalorder %s33, 1
      %s609 = scalar_select %p608, %s33, 1
      %p610 = scmp.lt.s32.totalorder %s607, 1
      %s611 = scalar_select %p610, %s607, 1
      %s612 = smul.addr %s609, 2
      %s613 = sadd.s32 %s611, %s612
      %s614 = smul.addr %s613, 4
      %s615 = scalar_lea.vmem %s13, %s614
      %p616 = pneg %p386
      %p617 = pneg %p383
      %s618 = smul.u32 2, %s34
      %p619 = scmp.lt.s32.totalorder %s33, 1
      %s620 = scalar_select %p619, %s33, 1
      %p621 = scmp.lt.s32.totalorder %s618, 1
      %s622 = scalar_select %p621, %s618, 1
      %s623 = smul.addr %s620, 4
      %s624 = sadd.s32 %s622, %s623
      %s625 = smul.addr %s624, 4
      %s626 = scalar_lea.vmem %s14, %s625
      %p627 = pneg %p414
      %p628 = pneg %p411
      %s629 = smul.u32 2, %s34
      %p630 = scmp.lt.s32.totalorder %s33, 1
      %s631 = scalar_select %p630, %s33, 1
      %p632 = scmp.lt.s32.totalorder %s629, 1
      %s633 = scalar_select %p632, %s629, 1
      %s634 = smul.addr %s631, 2
      %s635 = sadd.s32 %s633, %s634
      %s636 = smul.addr %s635, 2
      %s637 = scalar_lea.vmem %s15, %s636
      %p638 = pneg %p442
      %p639 = pneg %p439
      %s640 = smul.u32 2, %s34
      %p641 = scmp.lt.s32.totalorder %s33, 1
      %s642 = scalar_select %p641, %s33, 1
      %p643 = scmp.lt.s32.totalorder %s640, 1
      %s644 = scalar_select %p643, %s640, 1
      %s645 = smul.addr %s642, 4
      %s646 = sadd.s32 %s644, %s645
      %s647 = smul.addr %s646, 4
      %s648 = scalar_lea.vmem %s16, %s647
      %p649 = pneg %p470
      %p650 = pneg %p467
      %s651 = smul.u32 2, %s34
      %p652 = scmp.lt.s32.totalorder %s33, 1
      %s653 = scalar_select %p652, %s33, 1
      %p654 = scmp.lt.s32.totalorder %s651, 1
      %s655 = scalar_select %p654, %s651, 1
      %s656 = smul.addr %s653, 4
      %s657 = sadd.s32 %s655, %s656
      %s658 = smul.addr %s657, 4
      %s659 = scalar_lea.vmem %s17, %s658
      %s660 = smul.u32 2, %s34
      %p661 = scmp.lt.s32.totalorder %s33, 1
      %s662 = scalar_select %p661, %s33, 1
      %p663 = scmp.lt.s32.totalorder %s660, 1
      %s664 = scalar_select %p663, %s660, 1
      %s665 = smul.addr %s662, 4
      %s666 = sadd.s32 %s664, %s665
      %s667 = smul.addr %s666, 8
      %s668 = scalar_lea.vmem %s0, %s667
      %s669 = smul.u32 2, %s34
      %s670 = smul.u32 2, %s34
      %p671 = scmp.lt.s32.totalorder %s33, 1
      %s672 = scalar_select %p671, %s33, 1
      %p673 = scmp.lt.s32.totalorder %s670, 1
      %s674 = scalar_select %p673, %s670, 1
      %s675 = smul.addr %s672, 2
      %s676 = sadd.s32 %s674, %s675
      %s677 = smul.addr %s676, 4
      %s678 = scalar_lea.vmem %s1, %s677
      %s679 = smul.u32 2, %s34
      %s680 = smul.u32 2, %s34
      %p681 = scmp.lt.s32.totalorder %s33, 1
      %s682 = scalar_select %p681, %s33, 1
      %p683 = scmp.lt.s32.totalorder %s680, 1
      %s684 = scalar_select %p683, %s680, 1
      %s685 = smul.addr %s682, 2
      %s686 = sadd.s32 %s684, %s685
      %s687 = smul.addr %s686, 4
      %s688 = scalar_lea.vmem %s12, %s687
      %s689 = smul.u32 2, %s34
      %s690 = smul.u32 2, %s34
      %p691 = scmp.lt.s32.totalorder %s33, 1
      %s692 = scalar_select %p691, %s33, 1
      %p693 = scmp.lt.s32.totalorder %s690, 1
      %s694 = scalar_select %p693, %s690, 1
      %s695 = smul.addr %s692, 2
      %s696 = sadd.s32 %s694, %s695
      %s697 = smul.addr %s696, 4
      %s698 = scalar_lea.vmem %s13, %s697
      %s699 = smul.u32 2, %s34
      %s700 = smul.u32 2, %s34
      %p701 = scmp.lt.s32.totalorder %s33, 1
      %s702 = scalar_select %p701, %s33, 1
      %p703 = scmp.lt.s32.totalorder %s700, 1
      %s704 = scalar_select %p703, %s700, 1
      %s705 = smul.addr %s702, 4
      %s706 = sadd.s32 %s704, %s705
      %s707 = smul.addr %s706, 4
      %s708 = scalar_lea.vmem %s14, %s707
      %s709 = smul.u32 2, %s34
      %s710 = smul.u32 2, %s34
      %p711 = scmp.lt.s32.totalorder %s33, 1
      %s712 = scalar_select %p711, %s33, 1
      %p713 = scmp.lt.s32.totalorder %s710, 1
      %s714 = scalar_select %p713, %s710, 1
      %s715 = smul.addr %s712, 2
      %s716 = sadd.s32 %s714, %s715
      %s717 = smul.addr %s716, 2
      %s718 = scalar_lea.vmem %s15, %s717
      %s719 = smul.u32 2, %s34
      %s720 = smul.u32 2, %s34
      %p721 = scmp.lt.s32.totalorder %s33, 1
      %s722 = scalar_select %p721, %s33, 1
      %p723 = scmp.lt.s32.totalorder %s720, 1
      %s724 = scalar_select %p723, %s720, 1
      %s725 = smul.addr %s722, 4
      %s726 = sadd.s32 %s724, %s725
      %s727 = smul.addr %s726, 4
      %s728 = scalar_lea.vmem %s16, %s727
      %s729 = smul.u32 2, %s34
      %s730 = smul.u32 2, %s34
      %p731 = scmp.lt.s32.totalorder %s33, 1
      %s732 = scalar_select %p731, %s33, 1
      %p733 = scmp.lt.s32.totalorder %s730, 1
      %s734 = scalar_select %p733, %s730, 1
      %s735 = smul.addr %s732, 4
      %s736 = sadd.s32 %s734, %s735
      %s737 = smul.addr %s736, 4
      %s738 = scalar_lea.vmem %s17, %s737
      %s739 = smul.u32 2, %s34
      %v740 = vld [vmem:[%s668] sm:$0xff]
      %v741 = vld [vmem:[%s668 + $0x8] sm:$0xff]
      %v742 = vld [vmem:[%s668 + $0x10] sm:$0xff]
      %v743 = vld [vmem:[%s668 + $0x18] sm:$0xff]
      %v744 = vld [vmem:[%s678] sm:$0x77]
      %v745 = vld [vmem:[%s2] sm:$0xff]
      %v746 = vld [vmem:[%s3] sm:$0xff]
      %748 = vset.pattern.permute.xlu0 0
      %749 = vperm.xlu0 %748, %v746
      %v750 = vpop.permute.xlu0 %749
      %vm752 = vcmask 130048
      %v754 = vsel %vm752, %v745, 0
      %756 = vmatpush.msra.mxu0 0.0
      %757 = vmatpush.msra.mxu0 0.0
      %758 = vmatpush.msra.mxu0 0.0
      %759 = vmatpush.msra.mxu0 0.0
      %760 = vmatpush.msra.mxu0 0.0
      %761 = vmatpush.msra.mxu0 0.0
      %762 = vmatpush.msra.mxu0 0.0
      %763 = vmatpush.msra.mxu0 0.0
      %764 = vmatpush.msra.mxu0 0.0
      %765 = vmatpush.msra.mxu0 0.0
      %766 = vmatpush.msra.mxu0 0.0
      %767 = vmatpush.msra.mxu0 0.0
      %768 = vmatpush.msra.mxu0 0.0
      %769 = vmatpush.msra.mxu0 0.0
      %770 = vmatpush.msra.mxu0 %v742
      %771 = vmatpush.msra.mxu0 %v740
      %772 = vmatmul.f32.gmra.mxu0 %v754
      %v773 = vpop.f32.mrf.mxu0
      %v774 = vadd.f32 %v750, %v773
      %775 = vdwg.mxu0
      %776 = vmatpush.msra.mxu0 0.0
      %777 = vmatpush.msra.mxu0 0.0
      %778 = vmatpush.msra.mxu0 0.0
      %779 = vmatpush.msra.mxu0 0.0
      %780 = vmatpush.msra.mxu0 0.0
      %781 = vmatpush.msra.mxu0 0.0
      %782 = vmatpush.msra.mxu0 0.0
      %783 = vmatpush.msra.mxu0 0.0
      %784 = vmatpush.msra.mxu0 0.0
      %785 = vmatpush.msra.mxu0 0.0
      %786 = vmatpush.msra.mxu0 0.0
      %787 = vmatpush.msra.mxu0 0.0
      %788 = vmatpush.msra.mxu0 0.0
      %789 = vmatpush.msra.mxu0 0.0
      %790 = vmatpush.msra.mxu0 %v743
      %791 = vmatpush.msra.mxu0 %v741
      %792 = vmatmul.f32.gmra.mxu0 %v754
      %v793 = vpop.f32.mrf.mxu0
      %v794 = vadd.f32 %v750, %v793
      %795 = vdwg.mxu0
      %v796 = vrot.slane %v774, 4
      %v797 = vmax.f32 %v774, %v796
      %v798 = vrot.slane %v797, 2
      %v799 = vmax.f32 %v797, %v798
      %v800 = vrot.slane %v799, 1
      %v801 = vmax.f32 %v799, %v800
      %v802 = vrot.slane %v794, 4
      %v803 = vmax.f32 %v794, %v802
      %v804 = vrot.slane %v803, 2
      %v805 = vmax.f32 %v803, %v804
      %v806 = vrot.slane %v805, 1
      %v807 = vmax.f32 %v805, %v806
      %v808 = vsub.f32 %v774, %v801
      %v809 = vsub.f32 %v794, %v807
      %v810 = vmul.f32 %v808, 1.442695
      %v811 = vpow.pop %v810
      %v812 = vmul.f32 %v809, 1.442695
      %v813 = vpow.pop %v812
      %v814 = vrot.slane %v811, 4
      %v815 = vadd.f32 %v811, %v814
      %v816 = vrot.slane %v815, 2
      %v817 = vadd.f32 %v815, %v816
      %v818 = vrot.slane %v817, 1
      %v819 = vadd.f32 %v817, %v818
      %v820 = vrot.slane %v813, 4
      %v821 = vadd.f32 %v813, %v820
      %v822 = vrot.slane %v821, 2
      %v823 = vadd.f32 %v821, %v822
      %v824 = vrot.slane %v823, 1
      %v825 = vadd.f32 %v823, %v824
      %v826 = vrcp.pop %v819
      %v827 = vmul.f32 %v819, %v826
      %v828 = vsub.f32 1.0, %v827
      %v829 = vmul.f32 %v826, %v828
      %v830 = vadd.f32 %v826, %v829
      %vm831 = vweird.f32 %v819
      %vm832 = vweird.f32 %v826
      %vm833 = vmor %vm831, %vm832
      %v834 = vsel %vm833, %v826, %v830
      %v835 = vand.u32 2147483647, %v819
      %vm836 = vcmp.eq.f32.partialorder %v835, 8.507059e+37
      %v837 = vand.u32 %v819, 2147483648
      %v838 = vor.u32 1.1754944e-38, %v837
      %v839 = vsel %vm836, %v838, %v834
      %v840 = vmul.f32 %v811, %v839
      %v841 = vrcp.pop %v825
      %v842 = vmul.f32 %v825, %v841
      %v843 = vsub.f32 1.0, %v842
      %v844 = vmul.f32 %v841, %v843
      %v845 = vadd.f32 %v841, %v844
      %vm846 = vweird.f32 %v825
      %vm847 = vweird.f32 %v841
      %vm848 = vmor %vm846, %vm847
      %v849 = vsel %vm848, %v841, %v845
      %v850 = vand.u32 2147483647, %v825
      %vm851 = vcmp.eq.f32.partialorder %v850, 8.507059e+37
      %v852 = vand.u32 %v825, 2147483648
      %v853 = vor.u32 1.1754944e-38, %v852
      %v854 = vsel %vm851, %v853, %v849
      %v855 = vmul.f32 %v813, %v854
      %v856 = vpack.c.bf16 %v855, %v840
      %857 = vst [vmem:[%s688] sm:$0xff] %v856
      %v858 = vld [vmem:[%s6] sm:$0xff]
      %v859 = vld [vmem:[%s6 + $0x8] sm:$0xff]
      %v860 = vld [vmem:[%s7] sm:$0xff]
      %v861 = vld [vmem:[%s7 + $0x8] sm:$0xff]
      %863 = vset.pattern.permute.xlu0 0
      %864 = vperm.xlu0 %863, %v860
      %v865 = vpop.permute.xlu0 %864
      %868 = vset.pattern.permute.xlu0 0
      %869 = vperm.xlu0 %868, %v861
      %v870 = vpop.permute.xlu0 %869
      %vm872 = vcmask 64512
      %v874 = vsel %vm872, %v858, 0
      %v877 = vsel %vm872, %v859, 0
      %879 = vmatpush.msra.mxu0 0.0
      %880 = vmatpush.msra.mxu0 0.0
      %881 = vmatpush.msra.mxu0 0.0
      %882 = vmatpush.msra.mxu0 0.0
      %883 = vmatpush.msra.mxu0 0.0
      %884 = vmatpush.msra.mxu0 0.0
      %885 = vmatpush.msra.mxu0 0.0
      %886 = vmatpush.msra.mxu0 0.0
      %887 = vmatpush.msra.mxu0 0.0
      %888 = vmatpush.msra.mxu0 0.0
      %889 = vmatpush.msra.mxu0 0.0
      %890 = vmatpush.msra.mxu0 0.0
      %891 = vmatpush.msra.mxu0 0.0
      %892 = vmatpush.msra.mxu0 0.0
      %893 = vmatpush.msra.mxu0 0.0
      %894 = vmatpush.msra.mxu0 %v840
      %895 = vmatmul.f32.gmra.mxu0 %v874
      %v896 = vpop.f32.mrf.mxu0
      %v897 = vadd.f32 %v865, %v896
      %898 = vmatmul.f32.gmra.mxu0 %v877
      %v899 = vpop.f32.mrf.mxu0
      %v900 = vadd.f32 %v870, %v899
      %901 = vdwg.mxu0
      %902 = vmatpush.msra.mxu0 0.0
      %903 = vmatpush.msra.mxu0 0.0
      %904 = vmatpush.msra.mxu0 0.0
      %905 = vmatpush.msra.mxu0 0.0
      %906 = vmatpush.msra.mxu0 0.0
      %907 = vmatpush.msra.mxu0 0.0
      %908 = vmatpush.msra.mxu0 0.0
      %909 = vmatpush.msra.mxu0 0.0
      %910 = vmatpush.msra.mxu0 0.0
      %911 = vmatpush.msra.mxu0 0.0
      %912 = vmatpush.msra.mxu0 0.0
      %913 = vmatpush.msra.mxu0 0.0
      %914 = vmatpush.msra.mxu0 0.0
      %915 = vmatpush.msra.mxu0 0.0
      %916 = vmatpush.msra.mxu0 0.0
      %917 = vmatpush.msra.mxu0 %v855
      %918 = vmatmul.f32.gmra.mxu0 %v874
      %v919 = vpop.f32.mrf.mxu0
      %v920 = vadd.f32 %v865, %v919
      %921 = vmatmul.f32.gmra.mxu0 %v877
      %v922 = vpop.f32.mrf.mxu0
      %v923 = vadd.f32 %v870, %v922
      %924 = vdwg.mxu0
      %v925 = vpack.c.bf16 %v920, %v897
      %v926 = vpack.c.bf16 %v923, %v900
      %927 = vst [vmem:[%s708] sm:$0xff] %v925
      %928 = vst [vmem:[%s708 + $0x8] sm:$0xff] %v926
      %v929 = vld [vmem:[%s4] sm:$0xff]
      %v930 = vld [vmem:[%s5] sm:$0xff]
      %932 = vset.pattern.permute.xlu0 0
      %933 = vperm.xlu0 %932, %v930
      %v934 = vpop.permute.xlu0 %933
      %937 = vst [vmem:[#allocation1] ss:$2 sm:$0xff] %v744
      %v938 = vld.sshfl [vmem:[#allocation1] sm:$0xff pattern:$0x75316420]
      %v939 = vld.sshfl [vmem:[#allocation1 + $0x8] sm:$0xff pattern:$0x75316420]
      %vm940 = vcmask 23552
      %v942 = vsel %vm940, %v929, 0
      %vm944 = vcmask 1042432
      %v945 = vsel %vm944, %v938, 0
      %v947 = vsel %vm944, %v939, 0
      %949 = vmatpush.msra.mxu0 0.0
      %950 = vmatpush.msra.mxu0 0.0
      %951 = vmatpush.msra.mxu0 0.0
      %952 = vmatpush.msra.mxu0 0.0
      %953 = vmatpush.msra.mxu0 0.0
      %954 = vmatpush.msra.mxu0 0.0
      %955 = vmatpush.msra.mxu0 0.0
      %956 = vmatpush.msra.mxu0 0.0
      %957 = vmatpush.msra.mxu0 0.0
      %958 = vmatpush.msra.mxu0 0.0
      %959 = vmatpush.msra.mxu0 0.0
      %960 = vmatpush.msra.mxu0 0.0
      %961 = vmatpush.msra.mxu0 0.0
      %962 = vmatpush.msra.mxu0 0.0
      %963 = vmatpush.msra.mxu0 0.0
      %964 = vmatpush.msra.mxu0 %v945
      %965 = vmatmul.f32.gmra.mxu0 %v942
      %v966 = vpop.f32.mrf.mxu0
      %v967 = vadd.f32 %v934, %v966
      %968 = vdwg.mxu0
      %969 = vmatpush.msra.mxu0 0.0
      %970 = vmatpush.msra.mxu0 0.0
      %971 = vmatpush.msra.mxu0 0.0
      %972 = vmatpush.msra.mxu0 0.0
      %973 = vmatpush.msra.mxu0 0.0
      %974 = vmatpush.msra.mxu0 0.0
      %975 = vmatpush.msra.mxu0 0.0
      %976 = vmatpush.msra.mxu0 0.0
      %977 = vmatpush.msra.mxu0 0.0
      %978 = vmatpush.msra.mxu0 0.0
      %979 = vmatpush.msra.mxu0 0.0
      %980 = vmatpush.msra.mxu0 0.0
      %981 = vmatpush.msra.mxu0 0.0
      %982 = vmatpush.msra.mxu0 0.0
      %983 = vmatpush.msra.mxu0 0.0
      %984 = vmatpush.msra.mxu0 %v947
      %985 = vmatmul.f32.gmra.mxu0 %v942
      %v986 = vpop.f32.mrf.mxu0
      %v987 = vadd.f32 %v934, %v986
      %988 = vdwg.mxu0
      %v989 = vrot.slane %v967, 4
      %v990 = vmax.f32 %v967, %v989
      %v991 = vrot.slane %v990, 2
      %v992 = vmax.f32 %v990, %v991
      %v993 = vrot.slane %v992, 1
      %v994 = vmax.f32 %v992, %v993
      %v995 = vrot.slane %v987, 4
      %v996 = vmax.f32 %v987, %v995
      %v997 = vrot.slane %v996, 2
      %v998 = vmax.f32 %v996, %v997
      %v999 = vrot.slane %v998, 1
      %v1000 = vmax.f32 %v998, %v999
      %v1001 = vsub.f32 %v967, %v994
      %v1002 = vsub.f32 %v987, %v1000
      %v1003 = vmul.f32 %v1001, 1.442695
      %v1004 = vpow.pop %v1003
      %v1005 = vmul.f32 %v1002, 1.442695
      %v1006 = vpow.pop %v1005
      %v1007 = vrot.slane %v1004, 4
      %v1008 = vadd.f32 %v1004, %v1007
      %v1009 = vrot.slane %v1008, 2
      %v1010 = vadd.f32 %v1008, %v1009
      %v1011 = vrot.slane %v1010, 1
      %v1012 = vadd.f32 %v1010, %v1011
      %v1013 = vrot.slane %v1006, 4
      %v1014 = vadd.f32 %v1006, %v1013
      %v1015 = vrot.slane %v1014, 2
      %v1016 = vadd.f32 %v1014, %v1015
      %v1017 = vrot.slane %v1016, 1
      %v1018 = vadd.f32 %v1016, %v1017
      %v1019 = vrcp.pop %v1012
      %v1020 = vmul.f32 %v1012, %v1019
      %v1021 = vsub.f32 1.0, %v1020
      %v1022 = vmul.f32 %v1019, %v1021
      %v1023 = vadd.f32 %v1019, %v1022
      %vm1024 = vweird.f32 %v1012
      %vm1025 = vweird.f32 %v1019
      %vm1026 = vmor %vm1024, %vm1025
      %v1027 = vsel %vm1026, %v1019, %v1023
      %v1028 = vand.u32 2147483647, %v1012
      %vm1029 = vcmp.eq.f32.partialorder %v1028, 8.507059e+37
      %v1030 = vand.u32 %v1012, 2147483648
      %v1031 = vor.u32 1.1754944e-38, %v1030
      %v1032 = vsel %vm1029, %v1031, %v1027
      %v1033 = vmul.f32 %v1004, %v1032
      %v1034 = vrcp.pop %v1018
      %v1035 = vmul.f32 %v1018, %v1034
      %v1036 = vsub.f32 1.0, %v1035
      %v1037 = vmul.f32 %v1034, %v1036
      %v1038 = vadd.f32 %v1034, %v1037
      %vm1039 = vweird.f32 %v1018
      %vm1040 = vweird.f32 %v1034
      %vm1041 = vmor %vm1039, %vm1040
      %v1042 = vsel %vm1041, %v1034, %v1038
      %v1043 = vand.u32 2147483647, %v1018
      %vm1044 = vcmp.eq.f32.partialorder %v1043, 8.507059e+37
      %v1045 = vand.u32 %v1018, 2147483648
      %v1046 = vor.u32 1.1754944e-38, %v1045
      %v1047 = vsel %vm1044, %v1046, %v1042
      %v1048 = vmul.f32 %v1006, %v1047
      %v1049 = vpack.c.bf16 %v1048, %v1033
      %1050 = vst [vmem:[%s698] sm:$0xff] %v1049
      %v1051 = vld [vmem:[%s6] sm:$0xff]
      %v1052 = vld [vmem:[%s6 + $0x8] sm:$0xff]
      %v1053 = vld [vmem:[%s7] sm:$0xff]
      %v1054 = vld [vmem:[%s7 + $0x8] sm:$0xff]
      %1056 = vset.pattern.permute.xlu0 0
      %1057 = vperm.xlu0 %1056, %v1053
      %v1058 = vpop.permute.xlu0 %1057
      %1061 = vset.pattern.permute.xlu0 0
      %1062 = vperm.xlu0 %1061, %v1054
      %v1063 = vpop.permute.xlu0 %1062
      %v1066 = vsel %vm872, %v1051, 0
      %v1069 = vsel %vm872, %v1052, 0
      %1071 = vmatpush.msra.mxu0 0.0
      %1072 = vmatpush.msra.mxu0 0.0
      %1073 = vmatpush.msra.mxu0 0.0
      %1074 = vmatpush.msra.mxu0 0.0
      %1075 = vmatpush.msra.mxu0 0.0
      %1076 = vmatpush.msra.mxu0 0.0
      %1077 = vmatpush.msra.mxu0 0.0
      %1078 = vmatpush.msra.mxu0 0.0
      %1079 = vmatpush.msra.mxu0 0.0
      %1080 = vmatpush.msra.mxu0 0.0
      %1081 = vmatpush.msra.mxu0 0.0
      %1082 = vmatpush.msra.mxu0 0.0
      %1083 = vmatpush.msra.mxu0 0.0
      %1084 = vmatpush.msra.mxu0 0.0
      %1085 = vmatpush.msra.mxu0 0.0
      %1086 = vmatpush.msra.mxu0 %v1033
      %1087 = vmatmul.f32.gmra.mxu0 %v1066
      %v1088 = vpop.f32.mrf.mxu0
      %v1089 = vadd.f32 %v1058, %v1088
      %1090 = vmatmul.f32.gmra.mxu0 %v1069
      %v1091 = vpop.f32.mrf.mxu0
      %v1092 = vadd.f32 %v1063, %v1091
      %1093 = vdwg.mxu0
      %1094 = vmatpush.msra.mxu0 0.0
      %1095 = vmatpush.msra.mxu0 0.0
      %1096 = vmatpush.msra.mxu0 0.0
      %1097 = vmatpush.msra.mxu0 0.0
      %1098 = vmatpush.msra.mxu0 0.0
      %1099 = vmatpush.msra.mxu0 0.0
      %1100 = vmatpush.msra.mxu0 0.0
      %1101 = vmatpush.msra.mxu0 0.0
      %1102 = vmatpush.msra.mxu0 0.0
      %1103 = vmatpush.msra.mxu0 0.0
      %1104 = vmatpush.msra.mxu0 0.0
      %1105 = vmatpush.msra.mxu0 0.0
      %1106 = vmatpush.msra.mxu0 0.0
      %1107 = vmatpush.msra.mxu0 0.0
      %1108 = vmatpush.msra.mxu0 0.0
      %1109 = vmatpush.msra.mxu0 %v1048
      %1110 = vmatmul.f32.gmra.mxu0 %v1066
      %v1111 = vpop.f32.mrf.mxu0
      %v1112 = vadd.f32 %v1058, %v1111
      %1113 = vmatmul.f32.gmra.mxu0 %v1069
      %v1114 = vpop.f32.mrf.mxu0
      %v1115 = vadd.f32 %v1063, %v1114
      %1116 = vdwg.mxu0
      %v1117 = vpack.c.bf16 %v1112, %v1089
      %v1118 = vpack.c.bf16 %v1115, %v1092
      %1119 = vst [vmem:[%s728] sm:$0xff] %v1117
      %1120 = vst [vmem:[%s728 + $0x8] sm:$0xff] %v1118
      %v1121 = vld [vmem:[%s8] sm:$0xff]
      %v1122 = vld [vmem:[%s8 + $0x8] sm:$0xff]
      %v1123 = vld [vmem:[%s9] sm:$0xff]
      %v1124 = vld [vmem:[%s9 + $0x8] sm:$0xff]
      %1126 = vset.pattern.permute.xlu0 0
      %1127 = vperm.xlu0 %1126, %v1123
      %v1128 = vpop.permute.xlu0 %1127
      %1131 = vset.pattern.permute.xlu0 0
      %1132 = vperm.xlu0 %1131, %v1124
      %v1133 = vpop.permute.xlu0 %1132
      %v1136 = vsel %vm872, %v1121, 0
      %v1139 = vsel %vm872, %v1122, 0
      %1141 = vmatpush.msra.mxu0 0.0
      %1142 = vmatpush.msra.mxu0 0.0
      %1143 = vmatpush.msra.mxu0 0.0
      %1144 = vmatpush.msra.mxu0 0.0
      %1145 = vmatpush.msra.mxu0 0.0
      %1146 = vmatpush.msra.mxu0 0.0
      %1147 = vmatpush.msra.mxu0 0.0
      %1148 = vmatpush.msra.mxu0 0.0
      %1149 = vmatpush.msra.mxu0 0.0
      %1150 = vmatpush.msra.mxu0 0.0
      %1151 = vmatpush.msra.mxu0 0.0
      %1152 = vmatpush.msra.mxu0 0.0
      %1153 = vmatpush.msra.mxu0 0.0
      %1154 = vmatpush.msra.mxu0 0.0
      %1155 = vmatpush.msra.mxu0 0.0
      %1156 = vmatpush.msra.mxu0 %v1033
      %1157 = vmatmul.f32.gmra.mxu0 %v1136
      %v1158 = vpop.f32.mrf.mxu0
      %v1159 = vadd.f32 %v1128, %v1158
      %1160 = vmatmul.f32.gmra.mxu0 %v1139
      %v1161 = vpop.f32.mrf.mxu0
      %v1162 = vadd.f32 %v1133, %v1161
      %1163 = vdwg.mxu0
      %1164 = vmatpush.msra.mxu0 0.0
      %1165 = vmatpush.msra.mxu0 0.0
      %1166 = vmatpush.msra.mxu0 0.0
      %1167 = vmatpush.msra.mxu0 0.0
      %1168 = vmatpush.msra.mxu0 0.0
      %1169 = vmatpush.msra.mxu0 0.0
      %1170 = vmatpush.msra.mxu0 0.0
      %1171 = vmatpush.msra.mxu0 0.0
      %1172 = vmatpush.msra.mxu0 0.0
      %1173 = vmatpush.msra.mxu0 0.0
      %1174 = vmatpush.msra.mxu0 0.0
      %1175 = vmatpush.msra.mxu0 0.0
      %1176 = vmatpush.msra.mxu0 0.0
      %1177 = vmatpush.msra.mxu0 0.0
      %1178 = vmatpush.msra.mxu0 0.0
      %1179 = vmatpush.msra.mxu0 %v1048
      %1180 = vmatmul.f32.gmra.mxu0 %v1136
      %v1181 = vpop.f32.mrf.mxu0
      %v1182 = vadd.f32 %v1128, %v1181
      %1183 = vmatmul.f32.gmra.mxu0 %v1139
      %v1184 = vpop.f32.mrf.mxu0
      %v1185 = vadd.f32 %v1133, %v1184
      %1186 = vdwg.mxu0
      %v1187 = vpack.c.bf16 %v1182, %v1159
      %v1188 = vpack.c.bf16 %v1185, %v1162
      %1189 = vst [vmem:[%s738] sm:$0xff] %v1187
      %1190 = vst [vmem:[%s738 + $0x8] sm:$0xff] %v1188
      %v1191 = vld [vmem:[%s10] sm:$0x7]
      %v1192 = vld [vmem:[%s11] sm:$0x7]
      %1194 = vset.pattern.permute.xlu0 0
      %1195 = vperm.xlu0 %1194, %v1192
      %v1196 = vpop.permute.xlu0 %1195
      %v1199 = vsel %vm872, %v1191, 0
      %1201 = vmatpush.msra.mxu0 0.0
      %1202 = vmatpush.msra.mxu0 0.0
      %1203 = vmatpush.msra.mxu0 0.0
      %1204 = vmatpush.msra.mxu0 0.0
      %1205 = vmatpush.msra.mxu0 0.0
      %1206 = vmatpush.msra.mxu0 0.0
      %1207 = vmatpush.msra.mxu0 0.0
      %1208 = vmatpush.msra.mxu0 0.0
      %1209 = vmatpush.msra.mxu0 0.0
      %1210 = vmatpush.msra.mxu0 0.0
      %1211 = vmatpush.msra.mxu0 0.0
      %1212 = vmatpush.msra.mxu0 0.0
      %1213 = vmatpush.msra.mxu0 0.0
      %1214 = vmatpush.msra.mxu0 0.0
      %1215 = vmatpush.msra.mxu0 0.0
      %1216 = vmatpush.msra.mxu0 %v1033
      %1217 = vmatmul.f32.gmra.mxu0 %v1199
      %v1218 = vpop.f32.mrf.mxu0
      %v1219 = vadd.f32 %v1196, %v1218
      %1220 = vdwg.mxu0
      %1221 = vmatpush.msra.mxu0 0.0
      %1222 = vmatpush.msra.mxu0 0.0
      %1223 = vmatpush.msra.mxu0 0.0
      %1224 = vmatpush.msra.mxu0 0.0
      %1225 = vmatpush.msra.mxu0 0.0
      %1226 = vmatpush.msra.mxu0 0.0
      %1227 = vmatpush.msra.mxu0 0.0
      %1228 = vmatpush.msra.mxu0 0.0
      %1229 = vmatpush.msra.mxu0 0.0
      %1230 = vmatpush.msra.mxu0 0.0
      %1231 = vmatpush.msra.mxu0 0.0
      %1232 = vmatpush.msra.mxu0 0.0
      %1233 = vmatpush.msra.mxu0 0.0
      %1234 = vmatpush.msra.mxu0 0.0
      %1235 = vmatpush.msra.mxu0 0.0
      %1236 = vmatpush.msra.mxu0 %v1048
      %1237 = vmatmul.f32.gmra.mxu0 %v1199
      %v1238 = vpop.f32.mrf.mxu0
      %v1239 = vadd.f32 %v1196, %v1238
      %1240 = vdwg.mxu0
      %v1241 = vpack.c.bf16 %v1239, %v1219
      %v1243 = vrot.slane %v1241, 2
      %vm1244 = vcmask 1041408
      %v1247 = vsel %vm1244, %v1241, %v1243
      %vm1249 = vcmask 1041408
      %vm1250 = vsmask.f32 1280
      %vm1251 = vmand %vm1249, %vm1250
      %vm1252 = vcmask 1043458
      %vm1253 = vsmask.f32 3328
      %vm1254 = vmand %vm1252, %vm1253
      %vm1255 = vmor %vm1254, %vm1251
      %v1256 = vld [vmem:[%s718] sm:$0xf]
      %v1257 = vsel %vm1255, %v1247, %v1256
      %1258 = vst [vmem:[%s718] sm:$0xf] %v1257
      %s1259 = smul.u32 2, %s34
      %p1260 = scmp.lt.s32.totalorder %s33, 1
      %s1261 = scalar_select %p1260, %s33, 1
      %p1262 = scmp.lt.s32.totalorder %s1259, 1
      %s1263 = scalar_select %p1262, %s1259, 1
      %s1264 = smul.addr %s1261, 2
      %s1265 = sadd.s32 %s1263, %s1264
      %s1266 = smul.addr %s1265, 4
      %s1267 = scalar_lea.vmem %s12, %s1266
      %s1268 = smul.u32 2, %s34
      %p1269 = scmp.lt.s32.totalorder %s33, 1
      %s1270 = scalar_select %p1269, %s33, 1
      %p1271 = scmp.lt.s32.totalorder %s1268, 1
      %s1272 = scalar_select %p1271, %s1268, 1
      %s1273 = smul.addr %s1270, 2
      %s1274 = sadd.s32 %s1272, %s1273
      %s1275 = smul.addr %s1274, 4
      %s1276 = scalar_lea.vmem %s13, %s1275
      %s1277 = smul.u32 2, %s34
      %p1278 = scmp.lt.s32.totalorder %s33, 1
      %s1279 = scalar_select %p1278, %s33, 1
      %p1280 = scmp.lt.s32.totalorder %s1277, 1
      %s1281 = scalar_select %p1280, %s1277, 1
      %s1282 = smul.addr %s1279, 4
      %s1283 = sadd.s32 %s1281, %s1282
      %s1284 = smul.addr %s1283, 4
      %s1285 = scalar_lea.vmem %s14, %s1284
      %s1286 = smul.u32 2, %s34
      %p1287 = scmp.lt.s32.totalorder %s33, 1
      %s1288 = scalar_select %p1287, %s33, 1
      %p1289 = scmp.lt.s32.totalorder %s1286, 1
      %s1290 = scalar_select %p1289, %s1286, 1
      %s1291 = smul.addr %s1288, 2
      %s1292 = sadd.s32 %s1290, %s1291
      %s1293 = smul.addr %s1292, 2
      %s1294 = scalar_lea.vmem %s15, %s1293
      %s1295 = smul.u32 2, %s34
      %p1296 = scmp.lt.s32.totalorder %s33, 1
      %s1297 = scalar_select %p1296, %s33, 1
      %p1298 = scmp.lt.s32.totalorder %s1295, 1
      %s1299 = scalar_select %p1298, %s1295, 1
      %s1300 = smul.addr %s1297, 4
      %s1301 = sadd.s32 %s1299, %s1300
      %s1302 = smul.addr %s1301, 4
      %s1303 = scalar_lea.vmem %s16, %s1302
      %s1304 = smul.u32 2, %s34
      %p1305 = scmp.lt.s32.totalorder %s33, 1
      %s1306 = scalar_select %p1305, %s33, 1
      %p1307 = scmp.lt.s32.totalorder %s1304, 1
      %s1308 = scalar_select %p1307, %s1304, 1
      %s1309 = smul.addr %s1306, 4
      %s1310 = sadd.s32 %s1308, %s1309
      %s1311 = smul.addr %s1310, 4
      %s1312 = scalar_lea.vmem %s17, %s1311
      // Predicated region
      $region69: #{generator_forward.1} parent=67 // pred_check
        %p1313 = pneg %p327
      $region70: #{generator_forward.1} parent=67 // pred_check_branch
        %1315 = sbr.rel (%p1313) target = $region72
      $region71: #{generator_forward.1} parent=67 // pred_region
        %s1316 = smul.u32 2, %s34
      $region72: #{generator_forward.1} parent=67 // pred_fallthru
        _
      // Predicated region
      $region73: #{generator_forward.1} parent=67 // pred_check
        %p1317 = pneg %p355
      $region74: #{generator_forward.1} parent=67 // pred_check_branch
        %1319 = sbr.rel (%p1317) target = $region76
      $region75: #{generator_forward.1} parent=67 // pred_region
        %s1320 = smul.u32 2, %s34
      $region76: #{generator_forward.1} parent=67 // pred_fallthru
        _
      // Predicated region
      $region77: #{generator_forward.1} parent=67 // pred_check
        %p1321 = pneg %p383
      $region78: #{generator_forward.1} parent=67 // pred_check_branch
        %1323 = sbr.rel (%p1321) target = $region80
      $region79: #{generator_forward.1} parent=67 // pred_region
        %s1324 = smul.u32 2, %s34
      $region80: #{generator_forward.1} parent=67 // pred_fallthru
        _
      // Predicated region
      $region81: #{generator_forward.1} parent=67 // pred_check
        %p1325 = pneg %p411
      $region82: #{generator_forward.1} parent=67 // pred_check_branch
        %1327 = sbr.rel (%p1325) target = $region84
      $region83: #{generator_forward.1} parent=67 // pred_region
        %s1328 = smul.u32 2, %s34
      $region84: #{generator_forward.1} parent=67 // pred_fallthru
        _
      // Predicated region
      $region85: #{generator_forward.1} parent=67 // pred_check
        %p1329 = pneg %p439
      $region86: #{generator_forward.1} parent=67 // pred_check_branch
        %1331 = sbr.rel (%p1329) target = $region88
      $region87: #{generator_forward.1} parent=67 // pred_region
        %s1332 = smul.u32 2, %s34
      $region88: #{generator_forward.1} parent=67 // pred_fallthru
        _
      // Predicated region
      $region89: #{generator_forward.1} parent=67 // pred_check
        %p1333 = pneg %p467
      $region90: #{generator_forward.1} parent=67 // pred_check_branch
        %1335 = sbr.rel (%p1333) target = $region92
      $region91: #{generator_forward.1} parent=67 // pred_region
        %s1336 = smul.u32 2, %s34
      $region92: #{generator_forward.1} parent=67 // pred_fallthru
        _
    $region68: #{generator_forward.1} parent=5 // pred_fallthru
      _
    %p1337 = scmp.le.s32.totalorder 2, %s24
    // Predicated region
    $region93: #{generator_forward.1} parent=5 // pred_check
      %p1338 = pneg %p1337
    $region94: #{generator_forward.1} parent=5 // pred_check_branch
      %1340 = sbr.rel (%p1338) target = $region96
    $region95: #{generator_forward.1} parent=5 // pred_region
      %s1341 = ssub.s32 %s24, 2
      // Predicated region
      $region97: #{generator_forward.1} parent=95 // pred_check
        %p1342 = pneg %p333
      $region98: #{generator_forward.1} parent=95 // pred_check_branch
        %1344 = sbr.rel (%p1342) target = $region100
      $region99: #{generator_forward.1} parent=95 // pred_region
        %s1345 = smul.u32 2, %s36
        %p1346 = scmp.lt.s32.totalorder %s35, 1
        %s1347 = scalar_select %p1346, %s35, 1
        %p1348 = scmp.lt.s32.totalorder %s1345, 1
        %s1349 = scalar_select %p1348, %s1345, 1
        %s1350 = smul.addr %s1347, 2
        %s1351 = sadd.s32 %s1349, %s1350
        %s1352 = smul.addr %s1351, 4
        %s1353 = scalar_lea.vmem %s12, %s1352
      $region100: #{generator_forward.1} parent=95 // pred_fallthru
        _
      // Predicated region
      $region101: #{generator_forward.1} parent=95 // pred_check
        %p1354 = pneg %p361
      $region102: #{generator_forward.1} parent=95 // pred_check_branch
        %1356 = sbr.rel (%p1354) target = $region104
      $region103: #{generator_forward.1} parent=95 // pred_region
        %s1357 = smul.u32 2, %s36
        %p1358 = scmp.lt.s32.totalorder %s35, 1
        %s1359 = scalar_select %p1358, %s35, 1
        %p1360 = scmp.lt.s32.totalorder %s1357, 1
        %s1361 = scalar_select %p1360, %s1357, 1
        %s1362 = smul.addr %s1359, 2
        %s1363 = sadd.s32 %s1361, %s1362
        %s1364 = smul.addr %s1363, 4
        %s1365 = scalar_lea.vmem %s13, %s1364
      $region104: #{generator_forward.1} parent=95 // pred_fallthru
        _
      // Predicated region
      $region105: #{generator_forward.1} parent=95 // pred_check
        %p1366 = pneg %p389
      $region106: #{generator_forward.1} parent=95 // pred_check_branch
        %1368 = sbr.rel (%p1366) target = $region108
      $region107: #{generator_forward.1} parent=95 // pred_region
        %s1369 = smul.u32 2, %s36
        %p1370 = scmp.lt.s32.totalorder %s35, 1
        %s1371 = scalar_select %p1370, %s35, 1
        %p1372 = scmp.lt.s32.totalorder %s1369, 1
        %s1373 = scalar_select %p1372, %s1369, 1
        %s1374 = smul.addr %s1371, 4
        %s1375 = sadd.s32 %s1373, %s1374
        %s1376 = smul.addr %s1375, 4
        %s1377 = scalar_lea.vmem %s14, %s1376
      $region108: #{generator_forward.1} parent=95 // pred_fallthru
        _
      // Predicated region
      $region109: #{generator_forward.1} parent=95 // pred_check
        %p1378 = pneg %p417
      $region110: #{generator_forward.1} parent=95 // pred_check_branch
        %1380 = sbr.rel (%p1378) target = $region112
      $region111: #{generator_forward.1} parent=95 // pred_region
        %s1381 = smul.u32 2, %s36
        %p1382 = scmp.lt.s32.totalorder %s35, 1
        %s1383 = scalar_select %p1382, %s35, 1
        %p1384 = scmp.lt.s32.totalorder %s1381, 1
        %s1385 = scalar_select %p1384, %s1381, 1
        %s1386 = smul.addr %s1383, 2
        %s1387 = sadd.s32 %s1385, %s1386
        %s1388 = smul.addr %s1387, 2
        %s1389 = scalar_lea.vmem %s15, %s1388
      $region112: #{generator_forward.1} parent=95 // pred_fallthru
        _
      // Predicated region
      $region113: #{generator_forward.1} parent=95 // pred_check
        %p1390 = pneg %p445
      $region114: #{generator_forward.1} parent=95 // pred_check_branch
        %1392 = sbr.rel (%p1390) target = $region116
      $region115: #{generator_forward.1} parent=95 // pred_region
        %s1393 = smul.u32 2, %s36
        %p1394 = scmp.lt.s32.totalorder %s35, 1
        %s1395 = scalar_select %p1394, %s35, 1
        %p1396 = scmp.lt.s32.totalorder %s1393, 1
        %s1397 = scalar_select %p1396, %s1393, 1
        %s1398 = smul.addr %s1395, 4
        %s1399 = sadd.s32 %s1397, %s1398
        %s1400 = smul.addr %s1399, 4
        %s1401 = scalar_lea.vmem %s16, %s1400
      $region116: #{generator_forward.1} parent=95 // pred_fallthru
        _
      // Predicated region
      $region117: #{generator_forward.1} parent=95 // pred_check
        %p1402 = pneg %p473
      $region118: #{generator_forward.1} parent=95 // pred_check_branch
        %1404 = sbr.rel (%p1402) target = $region120
      $region119: #{generator_forward.1} parent=95 // pred_region
        %s1405 = smul.u32 2, %s36
        %p1406 = scmp.lt.s32.totalorder %s35, 1
        %s1407 = scalar_select %p1406, %s35, 1
        %p1408 = scmp.lt.s32.totalorder %s1405, 1
        %s1409 = scalar_select %p1408, %s1405, 1
        %s1410 = smul.addr %s1407, 4
        %s1411 = sadd.s32 %s1409, %s1410
        %s1412 = smul.addr %s1411, 4
        %s1413 = scalar_lea.vmem %s17, %s1412
      $region120: #{generator_forward.1} parent=95 // pred_fallthru
        _
    $region96: #{generator_forward.1} parent=5 // pred_fallthru
      _
  $region6: #{generator_forward.1} parent=0 // loop_footer
    %s28 = sadd.s32 1, %s24
  $region7: #{generator_forward.1} parent=0 // loop_footer_branch
    %23 = sbr.rel target = $region3
  $region8: #{generator_forward.1} parent=0 // loop_exit
    _

</llo_original>
